<compile_context>
chip_gen: v7x
topology: tpu7x:2x2x1
jax: 0.10.0
libtpu: 0.0.40
codegen_flags: <defaults>
</compile_context>

<pallas_src>
import functools

import jax
import jax.numpy as jnp
from jax import lax
from jax.experimental import pallas as pl
from jax.experimental.pallas import tpu as pltpu


def attention_kernel(x_ref, wq_ref, wk_ref, wv_ref, wout_ref, o_ref,
                     q_scr, k_scr, v_scr, ho_scr, *, heads, dim_head, q_tile):
    cdt = x_ref.dtype                      # MXU operand dtype (f32 or bf16)
    qi = pl.program_id(1)

    # --- Hoisted K/V projections: once per batch element, wide lane-dense GEMMs.
    @pl.when(qi == 0)
    def _():
        x_full = x_ref[0]                                              # (N, D)
        k_scr[...] = jnp.dot(x_full, wk_ref[...],
                             preferred_element_type=jnp.float32).astype(cdt)
        v_scr[...] = jnp.dot(x_full, wv_ref[...],
                             preferred_element_type=jnp.float32).astype(cdt)

    # --- Query tile sliced from the resident full-token block (no duplicate input).
    q_start = pl.multiple_of(qi * q_tile, q_tile)
    x_q = x_ref[0, pl.ds(q_start, q_tile), :]                          # (tq, D)

    # --- Fused Q projection across all heads (scale folded into wq in wrapper).
    q_scr[...] = jnp.dot(x_q, wq_ref[...],
                         preferred_element_type=jnp.float32).astype(cdt)  # (tq, H*Dh)

    # --- Per-head attention; operands come from VMEM scratch (bounded live ranges).
    for h in range(heads):                 # static, small loop; static lane slices
        lo = h * dim_head
        hi = lo + dim_head
        q = q_scr[:, lo:hi]                                            # (tq, Dh)
        k = k_scr[:, lo:hi]                                            # (N,  Dh)
        v = v_scr[:, lo:hi]                                            # (N,  Dh)

        # q @ k^T without materializing a transpose: contract Dh of both operands.
        s = lax.dot_general(q, k, dimension_numbers=(((1,), (1,)), ((), ())),
                            preferred_element_type=jnp.float32)        # (tq, N)

        # Numerically-stable softmax in f32; normalize AFTER the PV matmul.
        s = s - jnp.max(s, axis=-1, keepdims=True)
        e = jnp.exp(s)
        inv = pl.reciprocal(jnp.sum(e, axis=-1, keepdims=True), approx=True)
        pv = jnp.dot(e.astype(cdt), v, preferred_element_type=jnp.float32)  # (tq, Dh)
        ho_scr[:, lo:hi] = (pv * inv).astype(cdt)

    # --- Single wide, full-depth output projection over all heads at once.
    o_ref[0] = jnp.dot(ho_scr[...], wout_ref[...],
                       preferred_element_type=jnp.float32).astype(o_ref.dtype)


def attention_pallas(x, w_qkv, w_out, *, heads, dim_head, q_tile=None):
    """x: (B, N, D); w_qkv: (D, 3*heads*dim_head); w_out: (heads*dim_head, D)."""
    B, N, D = x.shape
    inner = heads * dim_head
    assert w_qkv.shape == (D, 3 * inner) and w_out.shape == (inner, D)
    scale = float(dim_head) ** -0.5
    cdt = x.dtype

    # Free layout plumbing OUTSIDE the kernel: split the fused QKV weight into
    # three lane-dense (D, H*Dh) matrices (head h occupies lanes [h*Dh, (h+1)*Dh))
    # and fold the softmax scale into the Q weights.
    w_q = (w_qkv[:, :inner] * scale).astype(cdt)
    w_k = w_qkv[:, inner:2 * inner].astype(cdt)
    w_v = w_qkv[:, 2 * inner:].astype(cdt)
    w_o = w_out.astype(cdt)

    if q_tile is None:
        # 128 is a safe default; on v5e/v6e with large N, sweeping up to 256 is
        # worthwhile (fewer grid steps, larger MXU M-dim).
        q_tile = N if N <= 128 else 128
    assert N % q_tile == 0, "pad N (e.g. 197 -> 256) so query tiles divide evenly"

    kernel = functools.partial(attention_kernel, heads=heads,
                               dim_head=dim_head, q_tile=q_tile)
    grid = (B, N // q_tile)

    return pl.pallas_call(
        kernel,
        out_shape=jax.ShapeDtypeStruct((B, N, D), x.dtype),
        grid_spec=pltpu.PrefetchScalarGridSpec(
            num_scalar_prefetch=0,
            grid=grid,
            in_specs=[
                pl.BlockSpec((1, N, D), lambda b, qi: (b, 0, 0)),   # full tokens
                pl.BlockSpec((D, inner), lambda b, qi: (0, 0)),     # Wq (scaled)
                pl.BlockSpec((D, inner), lambda b, qi: (0, 0)),     # Wk
                pl.BlockSpec((D, inner), lambda b, qi: (0, 0)),     # Wv
                pl.BlockSpec((inner, D), lambda b, qi: (0, 0)),     # Wout
            ],
            out_specs=pl.BlockSpec((1, q_tile, D), lambda b, qi: (b, qi, 0)),
            scratch_shapes=[
                pltpu.VMEM((q_tile, inner), cdt),   # Q (all heads)
                pltpu.VMEM((N, inner), cdt),        # K (all heads), hoisted per batch
                pltpu.VMEM((N, inner), cdt),        # V (all heads), hoisted per batch
                pltpu.VMEM((q_tile, inner), cdt),   # per-head outputs, lane-packed
            ],
        ),
        compiler_params=pltpu.CompilerParams(
            # qi must be sequential per batch element (K/V scratch reuse);
            # batch axis stays parallel for megacore sharding.
            dimension_semantics=("parallel", "arbitrary"),
        ),
    )(x, w_q, w_k, w_v, w_o)


def attention_ref(x, w_qkv, w_out, *, heads, dim_head):
    """Pure-JAX reference mirroring the PyTorch forward (eval mode)."""
    B, N, D = x.shape
    inner = heads * dim_head
    scale = float(dim_head) ** -0.5
    qkv = x @ w_qkv                                            # (B, N, 3*inner)
    q, k, v = jnp.split(qkv, 3, axis=-1)                       # each (B, N, inner)

    def to_heads(t):  # b n (h d) -> b h n d
        return t.reshape(B, N, heads, dim_head).transpose(0, 2, 1, 3)

    q, k, v = map(to_heads, (q, k, v))
    dots = jnp.einsum("bhnd,bhmd->bhnm", q, k) * scale
    attn = jax.nn.softmax(dots, axis=-1)
    out = jnp.einsum("bhnm,bhmd->bhnd", attn, v)
    out = out.transpose(0, 2, 1, 3).reshape(B, N, inner)       # b h n d -> b n (h d)
    return out @ w_out


if __name__ == "__main__":
    # Small shapes consistent with the module: dim=32, heads=4, dim_head=16.
    B, N, dim = 2, 8, 32
    heads, dim_head = 4, 16
    inner = heads * dim_head

    key = jax.random.PRNGKey(0)
    kx, kq, ko = jax.random.split(key, 3)
    x = jax.random.normal(kx, (B, N, dim), dtype=jnp.float32)
    # Deterministic parameter init (Linear without bias), Kaiming-uniform-like scale.
    w_qkv = jax.random.uniform(
        kq, (dim, 3 * inner), dtype=jnp.float32,
        minval=-dim ** -0.5, maxval=dim ** -0.5)
    w_out = jax.random.uniform(
        ko, (inner, dim), dtype=jnp.float32,
        minval=-inner ** -0.5, maxval=inner ** -0.5)

    y_ref = attention_ref(x, w_qkv, w_out, heads=heads, dim_head=dim_head)

    # f32 path (approx reciprocal adds ~1e-3 relative error -> loosened tolerance).
    y = attention_pallas(x, w_qkv, w_out, heads=heads, dim_head=dim_head)
    y = jax.block_until_ready(y)
    assert jnp.allclose(y, y_ref, atol=1e-2, rtol=1e-2), "f32 mismatch vs reference"

    # bf16-operand path (f32 accumulation + f32 softmax inside the kernel).
    y16 = attention_pallas(x.astype(jnp.bfloat16), w_qkv, w_out,
                           heads=heads, dim_head=dim_head)
    y16 = jax.block_until_ready(y16)
    assert jnp.allclose(y16.astype(jnp.float32), y_ref, atol=6e-2, rtol=6e-2), \
        "bf16 mismatch vs reference"

    print("KERNEL_OK")
</pallas_src>

<mosaic_0001>
module attributes {stable_mosaic.version = 11 : i64} {
  func.func @attention_kernel(%arg0: i32, %arg1: i32, %arg2: memref<1x8x32xf32, #tpu.memory_space<vmem>>, %arg3: memref<32x64xf32, #tpu.memory_space<vmem>>, %arg4: memref<32x64xf32, #tpu.memory_space<vmem>>, %arg5: memref<32x64xf32, #tpu.memory_space<vmem>>, %arg6: memref<64x32xf32, #tpu.memory_space<vmem>>, %arg7: memref<1x8x32xf32, #tpu.memory_space<vmem>>, %arg8: memref<8x64xf32, #tpu.memory_space<vmem>>, %arg9: memref<8x64xf32, #tpu.memory_space<vmem>>, %arg10: memref<8x64xf32, #tpu.memory_space<vmem>>, %arg11: memref<8x64xf32, #tpu.memory_space<vmem>>) attributes {dimension_semantics = [#tpu.dimension_semantics<parallel>, #tpu.dimension_semantics<arbitrary>], iteration_bounds = array<i64: 2, 1>, scalar_prefetch = 0 : i64, scratch_operands = 4 : i64, tpu.core_type = #tpu.core_type<tc>, window_params = [{transform_indices = @transform_0, window_bounds = array<i64: 1, 8, 32>}, {pipeline_mode = #tpu.pipeline_mode<synchronous>, transform_indices = @transform_1, window_bounds = array<i64: 32, 64>}, {pipeline_mode = #tpu.pipeline_mode<synchronous>, transform_indices = @transform_2, window_bounds = array<i64: 32, 64>}, {pipeline_mode = #tpu.pipeline_mode<synchronous>, transform_indices = @transform_3, window_bounds = array<i64: 32, 64>}, {pipeline_mode = #tpu.pipeline_mode<synchronous>, transform_indices = @transform_4, window_bounds = array<i64: 64, 32>}, {transform_indices = @transform_5, window_bounds = array<i64: 1, 8, 32>}]} {
    %c0_i32 = arith.constant 0 : i32
    %0 = arith.cmpi eq, %arg1, %c0_i32 : i32
    %1 = arith.extui %0 : i1 to i32
    %c0_i32_0 = arith.constant 0 : i32
    %2 = arith.cmpi ne, %1, %c0_i32_0 : i32
    scf.if %2 {
      %c0_59 = arith.constant 0 : index
      %c0_60 = arith.constant 0 : index
      %c0_61 = arith.constant 0 : index
      %81 = vector.load %arg2[%c0_59, %c0_60, %c0_61] : memref<1x8x32xf32, #tpu.memory_space<vmem>>, vector<1x8x32xf32>
      %82 = vector.shape_cast %81 : vector<1x8x32xf32> to vector<8x32xf32>
      %c0_62 = arith.constant 0 : index
      %c0_63 = arith.constant 0 : index
      %83 = vector.load %arg4[%c0_62, %c0_63] : memref<32x64xf32, #tpu.memory_space<vmem>>, vector<32x64xf32>
      %cst_64 = arith.constant dense<0.000000e+00> : vector<8x64xf32>
      %84 = tpu.matmul %82, %83, %cst_64 {dimension_numbers = #tpu.dot_dimension_numbers<[1], [0], [0], [1], [0, 0, 1, 1], [], []>} : vector<8x32xf32>, vector<32x64xf32>, vector<8x64xf32> -> vector<8x64xf32>
      %c0_65 = arith.constant 0 : index
      %c0_66 = arith.constant 0 : index
      %85 = vector.load %arg9[%c0_65, %c0_66] : memref<8x64xf32, #tpu.memory_space<vmem>>, vector<8x64xf32>
      tpu.vector_store %arg9[%c0_65, %c0_66], %84 {strides = array<i32>} : memref<8x64xf32, #tpu.memory_space<vmem>>, vector<8x64xf32>,
      %c0_67 = arith.constant 0 : index
      %c0_68 = arith.constant 0 : index
      %86 = vector.load %arg5[%c0_67, %c0_68] : memref<32x64xf32, #tpu.memory_space<vmem>>, vector<32x64xf32>
      %cst_69 = arith.constant dense<0.000000e+00> : vector<8x64xf32>
      %87 = tpu.matmul %82, %86, %cst_69 {dimension_numbers = #tpu.dot_dimension_numbers<[1], [0], [0], [1], [0, 0, 1, 1], [], []>} : vector<8x32xf32>, vector<32x64xf32>, vector<8x64xf32> -> vector<8x64xf32>
      %c0_70 = arith.constant 0 : index
      %c0_71 = arith.constant 0 : index
      %88 = vector.load %arg10[%c0_70, %c0_71] : memref<8x64xf32, #tpu.memory_space<vmem>>, vector<8x64xf32>
      tpu.vector_store %arg10[%c0_70, %c0_71], %87 {strides = array<i32>} : memref<8x64xf32, #tpu.memory_space<vmem>>, vector<8x64xf32>,
    } else {
    }
    %c8_i32 = arith.constant 8 : i32
    %3 = arith.muli %arg1, %c8_i32 : i32
    %4 = tpu.assume_multiple %3, 8 : i32
    %c0 = arith.constant 0 : index
    %5 = arith.index_cast %4 : i32 to index
    %c0_1 = arith.constant 0 : index
    %6 = vector.load %arg2[%c0, %5, %c0_1] : memref<1x8x32xf32, #tpu.memory_space<vmem>>, vector<1x8x32xf32>
    %7 = vector.shape_cast %6 : vector<1x8x32xf32> to vector<8x32xf32>
    %c0_2 = arith.constant 0 : index
    %c0_3 = arith.constant 0 : index
    %8 = vector.load %arg3[%c0_2, %c0_3] : memref<32x64xf32, #tpu.memory_space<vmem>>, vector<32x64xf32>
    %cst = arith.constant dense<0.000000e+00> : vector<8x64xf32>
    %9 = tpu.matmul %7, %8, %cst {dimension_numbers = #tpu.dot_dimension_numbers<[1], [0], [0], [1], [0, 0, 1, 1], [], []>} : vector<8x32xf32>, vector<32x64xf32>, vector<8x64xf32> -> vector<8x64xf32>
    %c0_4 = arith.constant 0 : index
    %c0_5 = arith.constant 0 : index
    %10 = vector.load %arg8[%c0_4, %c0_5] : memref<8x64xf32, #tpu.memory_space<vmem>>, vector<8x64xf32>
    tpu.vector_store %arg8[%c0_4, %c0_5], %9 {strides = array<i32>} : memref<8x64xf32, #tpu.memory_space<vmem>>, vector<8x64xf32>,
    %c0_6 = arith.constant 0 : index
    %c0_7 = arith.constant 0 : index
    %11 = vector.load %arg8[%c0_6, %c0_7] : memref<8x64xf32, #tpu.memory_space<vmem>>, vector<8x16xf32>
    %c0_8 = arith.constant 0 : index
    %c0_9 = arith.constant 0 : index
    %12 = vector.load %arg9[%c0_8, %c0_9] : memref<8x64xf32, #tpu.memory_space<vmem>>, vector<8x16xf32>
    %c0_10 = arith.constant 0 : index
    %c0_11 = arith.constant 0 : index
    %13 = vector.load %arg10[%c0_10, %c0_11] : memref<8x64xf32, #tpu.memory_space<vmem>>, vector<8x16xf32>
    %cst_12 = arith.constant dense<0.000000e+00> : vector<8x8xf32>
    %14 = tpu.matmul %11, %12, %cst_12 {dimension_numbers = #tpu.dot_dimension_numbers<[1], [1], [0], [0], [0, 0, 1, 0], [], []>} : vector<8x16xf32>, vector<8x16xf32>, vector<8x8xf32> -> vector<8x8xf32>
    %cst_13 = arith.constant dense<0xFF800000> : vector<8xf32>
    %15 = vector.multi_reduction <maximumf>, %14, %cst_13 [1] : vector<8x8xf32> to vector<8xf32>
    %16 = vector.shape_cast %15 : vector<8xf32> to vector<8x1xf32>
    %17 = vector.broadcast %16 : vector<8x1xf32> to vector<8x8xf32>
    %18 = arith.subf %14, %17 : vector<8x8xf32>
    %19 = math.exp %18 : vector<8x8xf32>
    %cst_14 = arith.constant dense<0.000000e+00> : vector<8xf32>
    %20 = vector.multi_reduction <add>, %19, %cst_14 [1] : vector<8x8xf32> to vector<8xf32>
    %21 = vector.shape_cast %20 : vector<8xf32> to vector<8x1xf32>
    %22 = tpu.reciprocal %21 {approx = true} : vector<8x1xf32> -> vector<8x1xf32>
    %cst_15 = arith.constant dense<0.000000e+00> : vector<8x16xf32>
    %23 = tpu.matmul %19, %13, %cst_15 {dimension_numbers = #tpu.dot_dimension_numbers<[1], [0], [0], [1], [0, 0, 1, 1], [], []>} : vector<8x8xf32>, vector<8x16xf32>, vector<8x16xf32> -> vector<8x16xf32>
    %24 = vector.broadcast %22 : vector<8x1xf32> to vector<8x16xf32>
    %25 = arith.mulf %23, %24 : vector<8x16xf32>
    %c0_16 = arith.constant 0 : index
    %c0_17 = arith.constant 0 : index
    %26 = vector.load %arg11[%c0_16, %c0_17] : memref<8x64xf32, #tpu.memory_space<vmem>>, vector<8x16xf32>
    tpu.vector_store %arg11[%c0_16, %c0_17], %25 {strides = array<i32>} : memref<8x64xf32, #tpu.memory_space<vmem>>, vector<8x16xf32>,
    %c0_18 = arith.constant 0 : index
    %c16 = arith.constant 16 : index
    %27 = vector.load %arg8[%c0_18, %c16] : memref<8x64xf32, #tpu.memory_space<vmem>>, vector<8x16xf32>
    %c0_19 = arith.constant 0 : index
    %c16_20 = arith.constant 16 : index
    %28 = vector.load %arg9[%c0_19, %c16_20] : memref<8x64xf32, #tpu.memory_space<vmem>>, vector<8x16xf32>
    %c0_21 = arith.constant 0 : index
    %c16_22 = arith.constant 16 : index
    %29 = vector.load %arg10[%c0_21, %c16_22] : memref<8x64xf32, #tpu.memory_space<vmem>>, vector<8x16xf32>
    %cst_23 = arith.constant dense<0.000000e+00> : vector<8x8xf32>
    %30 = tpu.matmul %27, %28, %cst_23 {dimension_numbers = #tpu.dot_dimension_numbers<[1], [1], [0], [0], [0, 0, 1, 0], [], []>} : vector<8x16xf32>, vector<8x16xf32>, vector<8x8xf32> -> vector<8x8xf32>
    %cst_24 = arith.constant dense<0xFF800000> : vector<8xf32>
    %31 = vector.multi_reduction <maximumf>, %30, %cst_24 [1] : vector<8x8xf32> to vector<8xf32>
    %32 = vector.shape_cast %31 : vector<8xf32> to vector<8x1xf32>
    %33 = vector.broadcast %32 : vector<8x1xf32> to vector<8x8xf32>
    %34 = arith.subf %30, %33 : vector<8x8xf32>
    %35 = math.exp %34 : vector<8x8xf32>
    %cst_25 = arith.constant dense<0.000000e+00> : vector<8xf32>
    %36 = vector.multi_reduction <add>, %35, %cst_25 [1] : vector<8x8xf32> to vector<8xf32>
    %37 = vector.shape_cast %36 : vector<8xf32> to vector<8x1xf32>
    %38 = tpu.reciprocal %37 {approx = true} : vector<8x1xf32> -> vector<8x1xf32>
    %cst_26 = arith.constant dense<0.000000e+00> : vector<8x16xf32>
    %39 = tpu.matmul %35, %29, %cst_26 {dimension_numbers = #tpu.dot_dimension_numbers<[1], [0], [0], [1], [0, 0, 1, 1], [], []>} : vector<8x8xf32>, vector<8x16xf32>, vector<8x16xf32> -> vector<8x16xf32>
    %40 = vector.broadcast %38 : vector<8x1xf32> to vector<8x16xf32>
    %41 = arith.mulf %39, %40 : vector<8x16xf32>
    %c0_27 = arith.constant 0 : index
    %c16_28 = arith.constant 16 : index
    %42 = vector.load %arg11[%c0_27, %c16_28] : memref<8x64xf32, #tpu.memory_space<vmem>>, vector<8x16xf32>
    tpu.vector_store %arg11[%c0_27, %c16_28], %41 {strides = array<i32>} : memref<8x64xf32, #tpu.memory_space<vmem>>, vector<8x16xf32>,
    %c0_29 = arith.constant 0 : index
    %c32 = arith.constant 32 : index
    %43 = vector.load %arg8[%c0_29, %c32] : memref<8x64xf32, #tpu.memory_space<vmem>>, vector<8x16xf32>
    %c0_30 = arith.constant 0 : index
    %c32_31 = arith.constant 32 : index
    %44 = vector.load %arg9[%c0_30, %c32_31] : memref<8x64xf32, #tpu.memory_space<vmem>>, vector<8x16xf32>
    %c0_32 = arith.constant 0 : index
    %c32_33 = arith.constant 32 : index
    %45 = vector.load %arg10[%c0_32, %c32_33] : memref<8x64xf32, #tpu.memory_space<vmem>>, vector<8x16xf32>
    %cst_34 = arith.constant dense<0.000000e+00> : vector<8x8xf32>
    %46 = tpu.matmul %43, %44, %cst_34 {dimension_numbers = #tpu.dot_dimension_numbers<[1], [1], [0], [0], [0, 0, 1, 0], [], []>} : vector<8x16xf32>, vector<8x16xf32>, vector<8x8xf32> -> vector<8x8xf32>
    %cst_35 = arith.constant dense<0xFF800000> : vector<8xf32>
    %47 = vector.multi_reduction <maximumf>, %46, %cst_35 [1] : vector<8x8xf32> to vector<8xf32>
    %48 = vector.shape_cast %47 : vector<8xf32> to vector<8x1xf32>
    %49 = vector.broadcast %48 : vector<8x1xf32> to vector<8x8xf32>
    %50 = arith.subf %46, %49 : vector<8x8xf32>
    %51 = math.exp %50 : vector<8x8xf32>
    %cst_36 = arith.constant dense<0.000000e+00> : vector<8xf32>
    %52 = vector.multi_reduction <add>, %51, %cst_36 [1] : vector<8x8xf32> to vector<8xf32>
    %53 = vector.shape_cast %52 : vector<8xf32> to vector<8x1xf32>
    %54 = tpu.reciprocal %53 {approx = true} : vector<8x1xf32> -> vector<8x1xf32>
    %cst_37 = arith.constant dense<0.000000e+00> : vector<8x16xf32>
    %55 = tpu.matmul %51, %45, %cst_37 {dimension_numbers = #tpu.dot_dimension_numbers<[1], [0], [0], [1], [0, 0, 1, 1], [], []>} : vector<8x8xf32>, vector<8x16xf32>, vector<8x16xf32> -> vector<8x16xf32>
    %56 = vector.broadcast %54 : vector<8x1xf32> to vector<8x16xf32>
    %57 = arith.mulf %55, %56 : vector<8x16xf32>
    %c0_38 = arith.constant 0 : index
    %c32_39 = arith.constant 32 : index
    %58 = vector.load %arg11[%c0_38, %c32_39] : memref<8x64xf32, #tpu.memory_space<vmem>>, vector<8x16xf32>
    tpu.vector_store %arg11[%c0_38, %c32_39], %57 {strides = array<i32>} : memref<8x64xf32, #tpu.memory_space<vmem>>, vector<8x16xf32>,
    %c0_40 = arith.constant 0 : index
    %c48 = arith.constant 48 : index
    %59 = vector.load %arg8[%c0_40, %c48] : memref<8x64xf32, #tpu.memory_space<vmem>>, vector<8x16xf32>
    %c0_41 = arith.constant 0 : index
    %c48_42 = arith.constant 48 : index
    %60 = vector.load %arg9[%c0_41, %c48_42] : memref<8x64xf32, #tpu.memory_space<vmem>>, vector<8x16xf32>
    %c0_43 = arith.constant 0 : index
    %c48_44 = arith.constant 48 : index
    %61 = vector.load %arg10[%c0_43, %c48_44] : memref<8x64xf32, #tpu.memory_space<vmem>>, vector<8x16xf32>
    %cst_45 = arith.constant dense<0.000000e+00> : vector<8x8xf32>
    %62 = tpu.matmul %59, %60, %cst_45 {dimension_numbers = #tpu.dot_dimension_numbers<[1], [1], [0], [0], [0, 0, 1, 0], [], []>} : vector<8x16xf32>, vector<8x16xf32>, vector<8x8xf32> -> vector<8x8xf32>
    %cst_46 = arith.constant dense<0xFF800000> : vector<8xf32>
    %63 = vector.multi_reduction <maximumf>, %62, %cst_46 [1] : vector<8x8xf32> to vector<8xf32>
    %64 = vector.shape_cast %63 : vector<8xf32> to vector<8x1xf32>
    %65 = vector.broadcast %64 : vector<8x1xf32> to vector<8x8xf32>
    %66 = arith.subf %62, %65 : vector<8x8xf32>
    %67 = math.exp %66 : vector<8x8xf32>
    %cst_47 = arith.constant dense<0.000000e+00> : vector<8xf32>
    %68 = vector.multi_reduction <add>, %67, %cst_47 [1] : vector<8x8xf32> to vector<8xf32>
    %69 = vector.shape_cast %68 : vector<8xf32> to vector<8x1xf32>
    %70 = tpu.reciprocal %69 {approx = true} : vector<8x1xf32> -> vector<8x1xf32>
    %cst_48 = arith.constant dense<0.000000e+00> : vector<8x16xf32>
    %71 = tpu.matmul %67, %61, %cst_48 {dimension_numbers = #tpu.dot_dimension_numbers<[1], [0], [0], [1], [0, 0, 1, 1], [], []>} : vector<8x8xf32>, vector<8x16xf32>, vector<8x16xf32> -> vector<8x16xf32>
    %72 = vector.broadcast %70 : vector<8x1xf32> to vector<8x16xf32>
    %73 = arith.mulf %71, %72 : vector<8x16xf32>
    %c0_49 = arith.constant 0 : index
    %c48_50 = arith.constant 48 : index
    %74 = vector.load %arg11[%c0_49, %c48_50] : memref<8x64xf32, #tpu.memory_space<vmem>>, vector<8x16xf32>
    tpu.vector_store %arg11[%c0_49, %c48_50], %73 {strides = array<i32>} : memref<8x64xf32, #tpu.memory_space<vmem>>, vector<8x16xf32>,
    %c0_51 = arith.constant 0 : index
    %c0_52 = arith.constant 0 : index
    %75 = vector.load %arg11[%c0_51, %c0_52] : memref<8x64xf32, #tpu.memory_space<vmem>>, vector<8x64xf32>
    %c0_53 = arith.constant 0 : index
    %c0_54 = arith.constant 0 : index
    %76 = vector.load %arg6[%c0_53, %c0_54] : memref<64x32xf32, #tpu.memory_space<vmem>>, vector<64x32xf32>
    %cst_55 = arith.constant dense<0.000000e+00> : vector<8x32xf32>
    %77 = tpu.matmul %75, %76, %cst_55 {dimension_numbers = #tpu.dot_dimension_numbers<[1], [0], [0], [1], [0, 0, 1, 1], [], []>} : vector<8x64xf32>, vector<64x32xf32>, vector<8x32xf32> -> vector<8x32xf32>
    %c0_56 = arith.constant 0 : index
    %c0_57 = arith.constant 0 : index
    %c0_58 = arith.constant 0 : index
    %78 = vector.load %arg7[%c0_56, %c0_57, %c0_58] : memref<1x8x32xf32, #tpu.memory_space<vmem>>, vector<1x8x32xf32>
    %79 = vector.shape_cast %78 : vector<1x8x32xf32> to vector<8x32xf32>
    %80 = vector.shape_cast %77 : vector<8x32xf32> to vector<1x8x32xf32>
    tpu.vector_store %arg7[%c0_56, %c0_57, %c0_58], %80 {strides = array<i32>} : memref<1x8x32xf32, #tpu.memory_space<vmem>>, vector<1x8x32xf32>,
    return
  }
  func.func @transform_0(%arg0: i32, %arg1: i32) -> (i32, i32, i32) {
    %c0_i32 = arith.constant 0 : i32
    %c0_i32_0 = arith.constant 0 : i32
    %c0_i32_1 = arith.constant 0 : i32
    return %arg0, %c0_i32, %c0_i32_0 : i32, i32, i32
  }
  func.func @transform_1(%arg0: i32, %arg1: i32) -> (i32, i32) {
    %c0_i32 = arith.constant 0 : i32
    %c0_i32_0 = arith.constant 0 : i32
    %c0_i32_1 = arith.constant 0 : i32
    return %c0_i32, %c0_i32_0 : i32, i32
  }
  func.func @transform_2(%arg0: i32, %arg1: i32) -> (i32, i32) {
    %c0_i32 = arith.constant 0 : i32
    %c0_i32_0 = arith.constant 0 : i32
    %c0_i32_1 = arith.constant 0 : i32
    return %c0_i32, %c0_i32_0 : i32, i32
  }
  func.func @transform_3(%arg0: i32, %arg1: i32) -> (i32, i32) {
    %c0_i32 = arith.constant 0 : i32
    %c0_i32_0 = arith.constant 0 : i32
    %c0_i32_1 = arith.constant 0 : i32
    return %c0_i32, %c0_i32_0 : i32, i32
  }
  func.func @transform_4(%arg0: i32, %arg1: i32) -> (i32, i32) {
    %c0_i32 = arith.constant 0 : i32
    %c0_i32_0 = arith.constant 0 : i32
    %c0_i32_1 = arith.constant 0 : i32
    return %c0_i32, %c0_i32_0 : i32, i32
  }
  func.func @transform_5(%arg0: i32, %arg1: i32) -> (i32, i32, i32) {
    %c0_i32 = arith.constant 0 : i32
    %c0_i32_0 = arith.constant 0 : i32
    return %arg0, %arg1, %c0_i32 : i32, i32, i32
  }
}

</mosaic_0001>

<llo_original>
// kernel: tpu_custom_call.1
$region0: #{tpu_custom_call.1}
  #allocation0 [shape = 'u32[]', space=smem, size = 0x4, offset = 0x4, fixed_abs, tag = 'smem constant byte address 0x4 - core index']
  #allocation1 [shape = 'u32[144,128]{1,0:T(1,128)}', space=vmem, size = 0x12000, scoped, tag = 'internal scratch']
  #allocation2 [shape = 'f32[8,64]{1,0:T(8,128)}', space=vmem, size = 0x1000, scoped, tag = 'scratch operand']
  #allocation3 [shape = 'f32[8,64]{1,0:T(8,128)}', space=vmem, size = 0x1000, scoped, tag = 'scratch operand']
  #allocation4 [shape = 'f32[8,64]{1,0:T(8,128)}', space=vmem, size = 0x1000, scoped, tag = 'scratch operand']
  #allocation5 [shape = 'f32[8,64]{1,0:T(8,128)}', space=vmem, size = 0x1000, scoped, tag = 'scratch operand']
  %s0 = inlined_call_operand.hbm [shape: f32[2,8,32], index: 0, kind: input, shape index: {}]
  %s1 = inlined_call_operand.vmem [shape: f32[32,64], index: 1, kind: input, shape index: {}]
  %s2 = inlined_call_operand.vmem [shape: f32[32,64], index: 2, kind: input, shape index: {}]
  %s3 = inlined_call_operand.vmem [shape: f32[32,64], index: 3, kind: input, shape index: {}]
  %s4 = inlined_call_operand.vmem [shape: f32[64,32], index: 4, kind: input, shape index: {}]
  %s5 = inlined_call_operand.hbm [shape: f32[2,8,32], index: 5, kind: output, shape index: {}]
  %s6 = sld [smem:[#allocation0]]
  $region61: #{tpu_custom_call.1} parent=0
    _
  %s8 = ssub.s32 1, %s6
  %s9 = scalar_select 0, %s8, %s6
  $region1: #{tpu_custom_call.1} parent=0
    #allocation6 [shape = 'u8[8192]{0}', space=vmem, size = 0x2000, scoped, tag = 'input window, operand 0']
    #allocation7 [shape = 's32[2]{0}', space=sflag, size = 0x8, scoped, tag = 'scoped memory for tpu_custom_call.1']
    #allocation8 [shape = 's32[2]{0}', space=sflag, size = 0x8, scoped, tag = 'scoped memory for tpu_custom_call.1']
    #allocation9 [shape = 'u8[8192]{0}', space=vmem, size = 0x2000, scoped, tag = 'output window, operand 0']
    %10 = vsyncpa [#allocation7], 0
    %s11 = scalar_lea.sflag [#allocation7], 1
    %12 = vsyncpa %s11, 0
    %13 = vsyncpa [#allocation8], 0
    %s14 = scalar_lea.sflag [#allocation8], 1
    %15 = vsyncpa %s14, 0
    loop: start=0, step=1, limit=4
    $region2: #{tpu_custom_call.1} parent=1 // loop_pre_header
      _
    $region3: #{tpu_custom_call.1} parent=1 // loop_header
      %s17 = sphi 0, %s21
      %p18 = scmp.ge.s32.totalorder %s17, 4
      %s24 = sphi 0, %s36
      %s25 = sphi 0, %s32
      %s26 = sphi 0, %s24
      %s27 = sphi 0, %s25
      %s28 = sphi 0, %s26
      %s29 = sphi 0, %s27
      %s39 = sphi 0, %s41
      %s42 = sphi 0, %s39
      %s43 = sphi 0, %s42
      %s59 = sphi 0, %s43
      %s63 = sphi 0, %s63
      %s65 = sphi 0, %s63
      %s66 = sphi 0, %s65
      %s80 = sphi 0, %s66
      %s84 = sphi 0, %s84
      %s86 = sphi 0, %s84
      %s87 = sphi 0, %s86
      %s101 = sphi 0, %s87
      %s105 = sphi 0, %s105
      %s107 = sphi 0, %s105
      %s108 = sphi 0, %s107
      %s122 = sphi 0, %s108
      %s126 = sphi 0, %s126
      %s128 = sphi 0, %s126
      %s129 = sphi 0, %s128
      %s143 = sphi 0, %s129
      %s151 = sphi 0, %s153
      %s154 = sphi 0, %s151
      %s155 = sphi 0, %s154
      %s171 = sphi 0, %s155
    $region4: #{tpu_custom_call.1} parent=1 // loop_header_branch
      %20 = sbr.rel (%p18) target = $region8
    $region5: #{tpu_custom_call.1} parent=1 // loop_body
      %s22 = ssub.s32 %s17, 1
      %s23 = ssub.s32 %s17, 2
      %s30 = sadd.s32 1, %s25
      %p31 = scmp.ge.s32.totalorder %s30, 1
      %s32 = scalar_select %p31, 0, %s30
      %s33 = sadd.s32 1, %s24
      %s34 = scalar_select %p31, %s33, %s24
      %p35 = scmp.ge.s32.totalorder %s34, 2
      %s36 = scalar_select %p35, 0, %s34
      %s37 = ssub.s32 %s24, %s36
      %p38 = scmp.eq.s32.totalorder %s37, 0
      %s40 = sadd.s32 %s39, 1
      %s41 = scalar_select %p38, %s39, %s40
      %p44 = pneg %p38
      %p45 = scmp.eq.s32.totalorder %s17, 1
      %p46 = por %p44, %p45
      %p47 = scmp.ne.s32.totalorder %s39, %s42
      %p48 = scmp.eq.s32.totalorder %s17, 0
      %p49 = por %p47, %p48
      %p50 = scmp.ne.s32.totalorder %s39, %s42
      %p51 = scmp.eq.s32.totalorder %s22, 1
      %p52 = por %p50, %p51
      %p53 = scmp.ne.s32.totalorder %s42, %s43
      %p54 = scmp.eq.s32.totalorder %s22, 0
      %p55 = por %p53, %p54
      %p56 = scmp.ne.s32.totalorder %s42, %s43
      %p57 = scmp.eq.s32.totalorder %s23, 1
      %p58 = por %p56, %p57
      %p60 = scmp.ne.s32.totalorder %s43, %s59
      %p61 = scmp.eq.s32.totalorder %s23, 0
      %p62 = por %p60, %p61
      %s64 = sadd.s32 %s63, 1
      %p67 = scmp.eq.s32.totalorder %s17, 1
      %p68 = scmp.ne.s32.totalorder %s63, %s65
      %p69 = scmp.eq.s32.totalorder %s17, 0
      %p70 = por %p68, %p69
      %p71 = scmp.ne.s32.totalorder %s63, %s65
      %p72 = scmp.eq.s32.totalorder %s22, 1
      %p73 = por %p71, %p72
      %p74 = scmp.ne.s32.totalorder %s65, %s66
      %p75 = scmp.eq.s32.totalorder %s22, 0
      %p76 = por %p74, %p75
      %p77 = scmp.ne.s32.totalorder %s65, %s66
      %p78 = scmp.eq.s32.totalorder %s23, 1
      %p79 = por %p77, %p78
      %p81 = scmp.ne.s32.totalorder %s66, %s80
      %p82 = scmp.eq.s32.totalorder %s23, 0
      %p83 = por %p81, %p82
      %s85 = sadd.s32 %s84, 1
      %p88 = scmp.eq.s32.totalorder %s17, 1
      %p89 = scmp.ne.s32.totalorder %s84, %s86
      %p90 = scmp.eq.s32.totalorder %s17, 0
      %p91 = por %p89, %p90
      %p92 = scmp.ne.s32.totalorder %s84, %s86
      %p93 = scmp.eq.s32.totalorder %s22, 1
      %p94 = por %p92, %p93
      %p95 = scmp.ne.s32.totalorder %s86, %s87
      %p96 = scmp.eq.s32.totalorder %s22, 0
      %p97 = por %p95, %p96
      %p98 = scmp.ne.s32.totalorder %s86, %s87
      %p99 = scmp.eq.s32.totalorder %s23, 1
      %p100 = por %p98, %p99
      %p102 = scmp.ne.s32.totalorder %s87, %s101
      %p103 = scmp.eq.s32.totalorder %s23, 0
      %p104 = por %p102, %p103
      %s106 = sadd.s32 %s105, 1
      %p109 = scmp.eq.s32.totalorder %s17, 1
      %p110 = scmp.ne.s32.totalorder %s105, %s107
      %p111 = scmp.eq.s32.totalorder %s17, 0
      %p112 = por %p110, %p111
      %p113 = scmp.ne.s32.totalorder %s105, %s107
      %p114 = scmp.eq.s32.totalorder %s22, 1
      %p115 = por %p113, %p114
      %p116 = scmp.ne.s32.totalorder %s107, %s108
      %p117 = scmp.eq.s32.totalorder %s22, 0
      %p118 = por %p116, %p117
      %p119 = scmp.ne.s32.totalorder %s107, %s108
      %p120 = scmp.eq.s32.totalorder %s23, 1
      %p121 = por %p119, %p120
      %p123 = scmp.ne.s32.totalorder %s108, %s122
      %p124 = scmp.eq.s32.totalorder %s23, 0
      %p125 = por %p123, %p124
      %s127 = sadd.s32 %s126, 1
      %p130 = scmp.eq.s32.totalorder %s17, 1
      %p131 = scmp.ne.s32.totalorder %s126, %s128
      %p132 = scmp.eq.s32.totalorder %s17, 0
      %p133 = por %p131, %p132
      %p134 = scmp.ne.s32.totalorder %s126, %s128
      %p135 = scmp.eq.s32.totalorder %s22, 1
      %p136 = por %p134, %p135
      %p137 = scmp.ne.s32.totalorder %s128, %s129
      %p138 = scmp.eq.s32.totalorder %s22, 0
      %p139 = por %p137, %p138
      %p140 = scmp.ne.s32.totalorder %s128, %s129
      %p141 = scmp.eq.s32.totalorder %s23, 1
      %p142 = por %p140, %p141
      %p144 = scmp.ne.s32.totalorder %s129, %s143
      %p145 = scmp.eq.s32.totalorder %s23, 0
      %p146 = por %p144, %p145
      %s147 = ssub.s32 %s24, %s36
      %s148 = ssub.s32 %s25, %s32
      %s149 = sor.u32 %s147, %s148
      %p150 = scmp.eq.s32.totalorder %s149, 0
      %s152 = sadd.s32 %s151, 1
      %s153 = scalar_select %p150, %s151, %s152
      %p156 = pneg %p150
      %p157 = scmp.eq.s32.totalorder %s17, 1
      %p158 = por %p156, %p157
      %p159 = scmp.ne.s32.totalorder %s151, %s154
      %p160 = scmp.eq.s32.totalorder %s17, 0
      %p161 = por %p159, %p160
      %p162 = scmp.ne.s32.totalorder %s151, %s154
      %p163 = scmp.eq.s32.totalorder %s22, 1
      %p164 = por %p162, %p163
      %p165 = scmp.ne.s32.totalorder %s154, %s155
      %p166 = scmp.eq.s32.totalorder %s22, 0
      %p167 = por %p165, %p166
      %p168 = scmp.ne.s32.totalorder %s154, %s155
      %p169 = scmp.eq.s32.totalorder %s23, 1
      %p170 = por %p168, %p169
      %p172 = scmp.ne.s32.totalorder %s155, %s171
      %p173 = scmp.eq.s32.totalorder %s23, 0
      %p174 = por %p172, %p173
      %p175 = scmp.le.s32.totalorder 1, %s17
      %p176 = scmp.lt.s32.totalorder %s17, 3
      %p177 = pnand %p175, %p176
      %p178 = pneg %p177
      // Predicated region
      $region9: #{tpu_custom_call.1} parent=5 // pred_check
        _
      $region10: #{tpu_custom_call.1} parent=5 // pred_check_branch
        %180 = sbr.rel (%p177) target = $region12
      $region11: #{tpu_custom_call.1} parent=5 // pred_region
        %s181 = ssub.s32 %s17, 1
        // Predicated region
        $region13: #{tpu_custom_call.1} parent=11 // pred_check
          %p182 = pneg %p76
        $region14: #{tpu_custom_call.1} parent=11 // pred_check_branch
          %184 = sbr.rel (%p182) target = $region16
        $region15: #{tpu_custom_call.1} parent=11 // pred_region
          _
        $region16: #{tpu_custom_call.1} parent=11 // pred_fallthru
          _
        // Predicated region
        $region17: #{tpu_custom_call.1} parent=11 // pred_check
          %p185 = pneg %p97
        $region18: #{tpu_custom_call.1} parent=11 // pred_check_branch
          %187 = sbr.rel (%p185) target = $region20
        $region19: #{tpu_custom_call.1} parent=11 // pred_region
          _
        $region20: #{tpu_custom_call.1} parent=11 // pred_fallthru
          _
        // Predicated region
        $region21: #{tpu_custom_call.1} parent=11 // pred_check
          %p188 = pneg %p118
        $region22: #{tpu_custom_call.1} parent=11 // pred_check_branch
          %190 = sbr.rel (%p188) target = $region24
        $region23: #{tpu_custom_call.1} parent=11 // pred_region
          _
        $region24: #{tpu_custom_call.1} parent=11 // pred_fallthru
          _
        // Predicated region
        $region25: #{tpu_custom_call.1} parent=11 // pred_check
          %p191 = pneg %p139
        $region26: #{tpu_custom_call.1} parent=11 // pred_check_branch
          %193 = sbr.rel (%p191) target = $region28
        $region27: #{tpu_custom_call.1} parent=11 // pred_region
          _
        $region28: #{tpu_custom_call.1} parent=11 // pred_fallthru
          _
      $region12: #{tpu_custom_call.1} parent=5 // pred_fallthru
        _
      %p194 = scmp.lt.s32.totalorder %s17, 2
      // Predicated region
      $region29: #{tpu_custom_call.1} parent=5 // pred_check
        %p195 = pneg %p194
      $region30: #{tpu_custom_call.1} parent=5 // pred_check_branch
        %197 = sbr.rel (%p195) target = $region32
      $region31: #{tpu_custom_call.1} parent=5 // pred_region
        // Predicated region
        $region33: #{tpu_custom_call.1} parent=31 // pred_check
          %p198 = pneg %p49
        $region34: #{tpu_custom_call.1} parent=31 // pred_check_branch
          %200 = sbr.rel (%p198) target = $region36
        $region35: #{tpu_custom_call.1} parent=31 // pred_region
          %s201 = sand.u32 %s39, 1
          %s202 = scalar_lea.sflag [#allocation7], %s201
          %s203 = sand.u32 %s39, 1
          %s204 = smul.addr %s203, 8
          %s205 = scalar_lea.vmem [#allocation6], %s204
          %s207 = ssub.s32 128, 128
          %208 = vsyncadd %s202, %s207
          %s209 = smul.addr %s24, 128
          %s210 = scalar_lea.hbm %s0, %s209
          %s212 = sshll.u32 %s205, 4
          %s213 = int_to_ptr.vmem [resolvable:$true] %s212
          %215 = dma.hbm_to_vmem [thread:$0]  %s210, 128, %s213, %s202
        $region36: #{tpu_custom_call.1} parent=31 // pred_fallthru
          _
      $region32: #{tpu_custom_call.1} parent=5 // pred_fallthru
        _
      %p216 = scmp.le.s32.totalorder 1, %s17
      %p217 = scmp.lt.s32.totalorder %s17, 3
      %p218 = pnand %p216, %p217
      %p219 = pneg %p218
      // Predicated region
      $region37: #{tpu_custom_call.1} parent=5 // pred_check
        _
      $region38: #{tpu_custom_call.1} parent=5 // pred_check_branch
        %221 = sbr.rel (%p218) target = $region40
      $region39: #{tpu_custom_call.1} parent=5 // pred_region
        %s222 = ssub.s32 %s17, 1
        %s223 = sand.u32 %s42, 1
        %s224 = scalar_lea.sflag [#allocation7], %s223
        %s225 = sand.u32 %s42, 1
        %s226 = smul.addr %s225, 8
        %s227 = scalar_lea.vmem [#allocation6], %s226
        // Predicated region
        $region41: #{tpu_custom_call.1} parent=39 // pred_check
          %p228 = pneg %p55
        $region42: #{tpu_custom_call.1} parent=39 // pred_check_branch
          %230 = sbr.rel (%p228) target = $region44
        $region43: #{tpu_custom_call.1} parent=39 // pred_region
          %231 = dma.done %s224, 128
        $region44: #{tpu_custom_call.1} parent=39 // pred_fallthru
          _
        %s232 = sand.u32 %s42, 1
        %s233 = scalar_lea.sflag [#allocation7], %s232
        %s234 = sand.u32 %s42, 1
        %s235 = smul.addr %s234, 8
        %s236 = scalar_lea.vmem [#allocation6], %s235
        %p237 = pneg %p55
        %p238 = pneg %p52
        %p239 = pneg %p76
        %p240 = pneg %p73
        %p241 = pneg %p97
        %p242 = pneg %p94
        %p243 = pneg %p118
        %p244 = pneg %p115
        %p245 = pneg %p139
        %p246 = pneg %p136
        %p247 = pneg %p167
        %p248 = pneg %p164
        %s249 = sand.u32 %s154, 1
        %s250 = scalar_lea.sflag [#allocation8], %s249
        %s251 = sand.u32 %s154, 1
        %s252 = smul.addr %s251, 8
        %s253 = scalar_lea.vmem [#allocation9], %s252
        %p254 = scmp.eq.s32.totalorder %s27, 0
        // Predicated region
        $region45: #{tpu_custom_call.1} parent=39 // pred_check
          %p255 = pneg %p254
        $region46: #{tpu_custom_call.1} parent=39 // pred_check_branch
          %257 = sbr.rel (%p255) target = $region48
        $region47: #{tpu_custom_call.1} parent=39 // pred_region
          %v258 = vld [vmem:[%s227] sm:$0xff]
          %v259 = vld [vmem:[%s2] sm:$0xff]
          %v260 = vld [vmem:[%s2 + $0x8] sm:$0xff]
          %v261 = vld [vmem:[%s2 + $0x10] sm:$0xff]
          %v262 = vld [vmem:[%s2 + $0x18] sm:$0xff]
          %vm263 = vcmask 261120
          %v265 = vsel %vm263, %v258, 0
          %267 = vmatprep.subr.mxu0 0.0
          %268 = vmatpush1.msra.mxu0 %v259
          %269 = vmatprep.subr.mxu0 0.0
          %270 = vmatpush1.msra.mxu0 %v260
          %271 = vmatprep.subr.mxu0 0.0
          %272 = vmatpush1.msra.mxu0 %v261
          %273 = vmatprep.subr.mxu0 0.0
          %274 = vmatpush1.msra.mxu0 %v262
          %275 = vmatprep.subr.mxu0 0.0
          %276 = vmatpush1.msra.mxu0 0.0
          %277 = vmatprep.subr.mxu0 0.0
          %278 = vmatpush1.msra.mxu0 0.0
          %279 = vmatprep.subr.mxu0 0.0
          %280 = vmatpush1.msra.mxu0 0.0
          %281 = vmatprep.subr.mxu0 0.0
          %282 = vmatpush1.msra.mxu0 0.0
          %283 = vmatprep.subr.mxu0 0.0
          %284 = vmatpush1.msra.mxu0 0.0
          %285 = vmatprep.subr.mxu0 0.0
          %286 = vmatpush1.msra.mxu0 0.0
          %287 = vmatprep.subr.mxu0 0.0
          %288 = vmatpush1.msra.mxu0 0.0
          %289 = vmatprep.subr.mxu0 0.0
          %290 = vmatpush1.msra.mxu0 0.0
          %291 = vmatprep.subr.mxu0 0.0
          %292 = vmatpush1.msra.mxu0 0.0
          %293 = vmatprep.subr.mxu0 0.0
          %294 = vmatpush1.msra.mxu0 0.0
          %295 = vmatprep.subr.mxu0 0.0
          %296 = vmatpush1.msra.mxu0 0.0
          %297 = vmatprep.subr.mxu0 0.0
          %298 = vmatpush1.msra.mxu0 0.0
          %299 = vmatprep.subr.mxu0 0.0
          %300 = vmatpush1.msra.mxu0 0.0
          %301 = vmatprep.subr.mxu0 0.0
          %302 = vmatpush1.msra.mxu0 0.0
          %303 = vmatprep.subr.mxu0 0.0
          %304 = vmatpush1.msra.mxu0 0.0
          %305 = vmatprep.subr.mxu0 0.0
          %306 = vmatpush1.msra.mxu0 0.0
          %307 = vmatprep.subr.mxu0 0.0
          %308 = vmatpush1.msra.mxu0 0.0
          %309 = vmatprep.subr.mxu0 0.0
          %310 = vmatpush1.msra.mxu0 0.0
          %311 = vmatprep.subr.mxu0 0.0
          %312 = vmatpush1.msra.mxu0 0.0
          %313 = vmatprep.subr.mxu0 0.0
          %314 = vmatpush1.msra.mxu0 0.0
          %315 = vmatprep.subr.mxu0 0.0
          %316 = vmatpush1.msra.mxu0 0.0
          %317 = vmatprep.subr.mxu0 0.0
          %318 = vmatpush1.msra.mxu0 0.0
          %319 = vmatprep.subr.mxu0 0.0
          %320 = vmatpush1.msra.mxu0 0.0
          %321 = vmatprep.subr.mxu0 0.0
          %322 = vmatpush1.msra.mxu0 0.0
          %323 = vmatprep.subr.mxu0 0.0
          %324 = vmatpush1.msra.mxu0 0.0
          %325 = vmatprep.subr.mxu0 0.0
          %326 = vmatpush1.msra.mxu0 0.0
          %327 = vmatprep.subr.mxu0 0.0
          %328 = vmatpush1.msra.mxu0 0.0
          %329 = vmatprep.subr.mxu0 0.0
          %330 = vmatpush1.msra.mxu0 0.0
          %331 = vmatprep.mubr.f32.mxu0 0.0
          %332 = vmatmul.mubr.f32.gmra.mrb[0].mxu0 %v265
          %v333 = vpop.f32.mrb[0].mxu0
          %v334 = vadd.f32 0.0, %v333
          %v335 = vpop.f32.mrb[0].mxu0
          %336 = vdwg.mxu0
          %vm337 = vcmask 523264
          %338 = vst.msk [vmem:[#allocation3] sm:$0xff] %vm337, %v334
          %v339 = vld [vmem:[%s3] sm:$0xff]
          %v340 = vld [vmem:[%s3 + $0x8] sm:$0xff]
          %v341 = vld [vmem:[%s3 + $0x10] sm:$0xff]
          %v342 = vld [vmem:[%s3 + $0x18] sm:$0xff]
          %343 = vmatprep.subr.mxu0 0.0
          %344 = vmatpush1.msra.mxu0 %v339
          %345 = vmatprep.subr.mxu0 0.0
          %346 = vmatpush1.msra.mxu0 %v340
          %347 = vmatprep.subr.mxu0 0.0
          %348 = vmatpush1.msra.mxu0 %v341
          %349 = vmatprep.subr.mxu0 0.0
          %350 = vmatpush1.msra.mxu0 %v342
          %351 = vmatprep.subr.mxu0 0.0
          %352 = vmatpush1.msra.mxu0 0.0
          %353 = vmatprep.subr.mxu0 0.0
          %354 = vmatpush1.msra.mxu0 0.0
          %355 = vmatprep.subr.mxu0 0.0
          %356 = vmatpush1.msra.mxu0 0.0
          %357 = vmatprep.subr.mxu0 0.0
          %358 = vmatpush1.msra.mxu0 0.0
          %359 = vmatprep.subr.mxu0 0.0
          %360 = vmatpush1.msra.mxu0 0.0
          %361 = vmatprep.subr.mxu0 0.0
          %362 = vmatpush1.msra.mxu0 0.0
          %363 = vmatprep.subr.mxu0 0.0
          %364 = vmatpush1.msra.mxu0 0.0
          %365 = vmatprep.subr.mxu0 0.0
          %366 = vmatpush1.msra.mxu0 0.0
          %367 = vmatprep.subr.mxu0 0.0
          %368 = vmatpush1.msra.mxu0 0.0
          %369 = vmatprep.subr.mxu0 0.0
          %370 = vmatpush1.msra.mxu0 0.0
          %371 = vmatprep.subr.mxu0 0.0
          %372 = vmatpush1.msra.mxu0 0.0
          %373 = vmatprep.subr.mxu0 0.0
          %374 = vmatpush1.msra.mxu0 0.0
          %375 = vmatprep.subr.mxu0 0.0
          %376 = vmatpush1.msra.mxu0 0.0
          %377 = vmatprep.subr.mxu0 0.0
          %378 = vmatpush1.msra.mxu0 0.0
          %379 = vmatprep.subr.mxu0 0.0
          %380 = vmatpush1.msra.mxu0 0.0
          %381 = vmatprep.subr.mxu0 0.0
          %382 = vmatpush1.msra.mxu0 0.0
          %383 = vmatprep.subr.mxu0 0.0
          %384 = vmatpush1.msra.mxu0 0.0
          %385 = vmatprep.subr.mxu0 0.0
          %386 = vmatpush1.msra.mxu0 0.0
          %387 = vmatprep.subr.mxu0 0.0
          %388 = vmatpush1.msra.mxu0 0.0
          %389 = vmatprep.subr.mxu0 0.0
          %390 = vmatpush1.msra.mxu0 0.0
          %391 = vmatprep.subr.mxu0 0.0
          %392 = vmatpush1.msra.mxu0 0.0
          %393 = vmatprep.subr.mxu0 0.0
          %394 = vmatpush1.msra.mxu0 0.0
          %395 = vmatprep.subr.mxu0 0.0
          %396 = vmatpush1.msra.mxu0 0.0
          %397 = vmatprep.subr.mxu0 0.0
          %398 = vmatpush1.msra.mxu0 0.0
          %399 = vmatprep.subr.mxu0 0.0
          %400 = vmatpush1.msra.mxu0 0.0
          %401 = vmatprep.subr.mxu0 0.0
          %402 = vmatpush1.msra.mxu0 0.0
          %403 = vmatprep.subr.mxu0 0.0
          %404 = vmatpush1.msra.mxu0 0.0
          %405 = vmatprep.subr.mxu0 0.0
          %406 = vmatpush1.msra.mxu0 0.0
          %407 = vmatprep.mubr.f32.mxu0 0.0
          %408 = vmatmul.mubr.f32.gmra.mrb[0].mxu0 %v265
          %v409 = vpop.f32.mrb[0].mxu0
          %v410 = vadd.f32 0.0, %v409
          %v411 = vpop.f32.mrb[0].mxu0
          %412 = vdwg.mxu0
          %413 = vst.msk [vmem:[#allocation4] sm:$0xff] %vm337, %v410
        $region48: #{tpu_custom_call.1} parent=39 // pred_fallthru
          _
        %s414 = smul.u32 %s27, 8
        %s415 = scalar_lea.vmem %s227, %s414 [#allocation6]
        %v416 = vld [vmem:[%s415] sm:$0xff]
        %v417 = vld [vmem:[%s1] sm:$0xff]
        %v418 = vld [vmem:[%s1 + $0x8] sm:$0xff]
        %v419 = vld [vmem:[%s1 + $0x10] sm:$0xff]
        %v420 = vld [vmem:[%s1 + $0x18] sm:$0xff]
        %vm421 = vcmask 261120
        %v423 = vsel %vm421, %v416, 0
        %425 = vmatprep.subr.mxu0 0.0
        %426 = vmatpush1.msra.mxu0 %v417
        %427 = vmatprep.subr.mxu0 0.0
        %428 = vmatpush1.msra.mxu0 %v418
        %429 = vmatprep.subr.mxu0 0.0
        %430 = vmatpush1.msra.mxu0 %v419
        %431 = vmatprep.subr.mxu0 0.0
        %432 = vmatpush1.msra.mxu0 %v420
        %433 = vmatprep.subr.mxu0 0.0
        %434 = vmatpush1.msra.mxu0 0.0
        %435 = vmatprep.subr.mxu0 0.0
        %436 = vmatpush1.msra.mxu0 0.0
        %437 = vmatprep.subr.mxu0 0.0
        %438 = vmatpush1.msra.mxu0 0.0
        %439 = vmatprep.subr.mxu0 0.0
        %440 = vmatpush1.msra.mxu0 0.0
        %441 = vmatprep.subr.mxu0 0.0
        %442 = vmatpush1.msra.mxu0 0.0
        %443 = vmatprep.subr.mxu0 0.0
        %444 = vmatpush1.msra.mxu0 0.0
        %445 = vmatprep.subr.mxu0 0.0
        %446 = vmatpush1.msra.mxu0 0.0
        %447 = vmatprep.subr.mxu0 0.0
        %448 = vmatpush1.msra.mxu0 0.0
        %449 = vmatprep.subr.mxu0 0.0
        %450 = vmatpush1.msra.mxu0 0.0
        %451 = vmatprep.subr.mxu0 0.0
        %452 = vmatpush1.msra.mxu0 0.0
        %453 = vmatprep.subr.mxu0 0.0
        %454 = vmatpush1.msra.mxu0 0.0
        %455 = vmatprep.subr.mxu0 0.0
        %456 = vmatpush1.msra.mxu0 0.0
        %457 = vmatprep.subr.mxu0 0.0
        %458 = vmatpush1.msra.mxu0 0.0
        %459 = vmatprep.subr.mxu0 0.0
        %460 = vmatpush1.msra.mxu0 0.0
        %461 = vmatprep.subr.mxu0 0.0
        %462 = vmatpush1.msra.mxu0 0.0
        %463 = vmatprep.subr.mxu0 0.0
        %464 = vmatpush1.msra.mxu0 0.0
        %465 = vmatprep.subr.mxu0 0.0
        %466 = vmatpush1.msra.mxu0 0.0
        %467 = vmatprep.subr.mxu0 0.0
        %468 = vmatpush1.msra.mxu0 0.0
        %469 = vmatprep.subr.mxu0 0.0
        %470 = vmatpush1.msra.mxu0 0.0
        %471 = vmatprep.subr.mxu0 0.0
        %472 = vmatpush1.msra.mxu0 0.0
        %473 = vmatprep.subr.mxu0 0.0
        %474 = vmatpush1.msra.mxu0 0.0
        %475 = vmatprep.subr.mxu0 0.0
        %476 = vmatpush1.msra.mxu0 0.0
        %477 = vmatprep.subr.mxu0 0.0
        %478 = vmatpush1.msra.mxu0 0.0
        %479 = vmatprep.subr.mxu0 0.0
        %480 = vmatpush1.msra.mxu0 0.0
        %481 = vmatprep.subr.mxu0 0.0
        %482 = vmatpush1.msra.mxu0 0.0
        %483 = vmatprep.subr.mxu0 0.0
        %484 = vmatpush1.msra.mxu0 0.0
        %485 = vmatprep.subr.mxu0 0.0
        %486 = vmatpush1.msra.mxu0 0.0
        %487 = vmatprep.subr.mxu0 0.0
        %488 = vmatpush1.msra.mxu0 0.0
        %489 = vmatprep.mubr.f32.mxu0 0.0
        %490 = vmatmul.mubr.f32.gmra.mrb[0].mxu0 %v423
        %v491 = vpop.f32.mrb[0].mxu0
        %v492 = vadd.f32 0.0, %v491
        %v493 = vpop.f32.mrb[0].mxu0
        %494 = vdwg.mxu0
        %vm495 = vcmask 523264
        %496 = vst.msk [vmem:[#allocation2] sm:$0xff] %vm495, %v492
        %v497 = vld [vmem:[#allocation2] sm:$0xff]
        %v498 = vld [vmem:[#allocation3] sm:$0xff]
        %v499 = vld [vmem:[#allocation4] sm:$0xff]
        %vm500 = vcmask 130048
        %v502 = vsel %vm500, %v497, 0
        %v505 = vsel %vm500, %v498, 0
        %507 = vmatprep.subr.mxu0 0.0
        %508 = vmatpush1.xpose.msra.mxu0 %v505
        %509 = vmatprep.subr.mxu0 0.0
        %510 = vmatpush1.xpose.msra.mxu0 0.0
        %511 = vmatprep.subr.mxu0 0.0
        %512 = vmatpush1.xpose.msra.mxu0 0.0
        %513 = vmatprep.subr.mxu0 0.0
        %514 = vmatpush1.xpose.msra.mxu0 0.0
        %515 = vmatprep.subr.mxu0 0.0
        %516 = vmatpush1.xpose.msra.mxu0 0.0
        %517 = vmatprep.subr.mxu0 0.0
        %518 = vmatpush1.xpose.msra.mxu0 0.0
        %519 = vmatprep.subr.mxu0 0.0
        %520 = vmatpush1.xpose.msra.mxu0 0.0
        %521 = vmatprep.subr.mxu0 0.0
        %522 = vmatpush1.xpose.msra.mxu0 0.0
        %523 = vmatprep.subr.mxu0 0.0
        %524 = vmatpush1.xpose.msra.mxu0 0.0
        %525 = vmatprep.subr.mxu0 0.0
        %526 = vmatpush1.xpose.msra.mxu0 0.0
        %527 = vmatprep.subr.mxu0 0.0
        %528 = vmatpush1.xpose.msra.mxu0 0.0
        %529 = vmatprep.subr.mxu0 0.0
        %530 = vmatpush1.xpose.msra.mxu0 0.0
        %531 = vmatprep.subr.mxu0 0.0
        %532 = vmatpush1.xpose.msra.mxu0 0.0
        %533 = vmatprep.subr.mxu0 0.0
        %534 = vmatpush1.xpose.msra.mxu0 0.0
        %535 = vmatprep.subr.mxu0 0.0
        %536 = vmatpush1.xpose.msra.mxu0 0.0
        %537 = vmatprep.subr.mxu0 0.0
        %538 = vmatpush1.xpose.msra.mxu0 0.0
        %539 = vmatprep.subr.mxu0 0.0
        %540 = vmatpush1.xpose.msra.mxu0 0.0
        %541 = vmatprep.subr.mxu0 0.0
        %542 = vmatpush1.xpose.msra.mxu0 0.0
        %543 = vmatprep.subr.mxu0 0.0
        %544 = vmatpush1.xpose.msra.mxu0 0.0
        %545 = vmatprep.subr.mxu0 0.0
        %546 = vmatpush1.xpose.msra.mxu0 0.0
        %547 = vmatprep.subr.mxu0 0.0
        %548 = vmatpush1.xpose.msra.mxu0 0.0
        %549 = vmatprep.subr.mxu0 0.0
        %550 = vmatpush1.xpose.msra.mxu0 0.0
        %551 = vmatprep.subr.mxu0 0.0
        %552 = vmatpush1.xpose.msra.mxu0 0.0
        %553 = vmatprep.subr.mxu0 0.0
        %554 = vmatpush1.xpose.msra.mxu0 0.0
        %555 = vmatprep.subr.mxu0 0.0
        %556 = vmatpush1.xpose.msra.mxu0 0.0
        %557 = vmatprep.subr.mxu0 0.0
        %558 = vmatpush1.xpose.msra.mxu0 0.0
        %559 = vmatprep.subr.mxu0 0.0
        %560 = vmatpush1.xpose.msra.mxu0 0.0
        %561 = vmatprep.subr.mxu0 0.0
        %562 = vmatpush1.xpose.msra.mxu0 0.0
        %563 = vmatprep.subr.mxu0 0.0
        %564 = vmatpush1.xpose.msra.mxu0 0.0
        %565 = vmatprep.subr.mxu0 0.0
        %566 = vmatpush1.xpose.msra.mxu0 0.0
        %567 = vmatprep.subr.mxu0 0.0
        %568 = vmatpush1.xpose.msra.mxu0 0.0
        %569 = vmatprep.subr.mxu0 0.0
        %570 = vmatpush1.xpose.msra.mxu0 0.0
        %571 = vmatprep.mubr.f32.mxu0 0.0
        %572 = vmatmul.mubr.f32.gmra.mrb[0].mxu0 %v502
        %v573 = vpop.f32.mrb[0].mxu0
        %v574 = vadd.f32 0.0, %v573
        %v575 = vpop.f32.mrb[0].mxu0
        %576 = vdwg.mxu0
        %vm577 = vcmask 64512
        %v578 = vsel %vm577, %v574, -inf
        %579 = vmax.xlane.f32.xlu0 %v578
        %v580 = vpop.xlane.xlu0 %579
        %v581 = vsub.f32 %v574, %v580
        %v582 = vmul.f32 %v581, 1.442695
        %v583 = vpow.pop %v582
        %v584 = vsel %vm577, %v583, 0.0
        %585 = vadd.xlane.f32.xlu0 %v584
        %v586 = vpop.xlane.xlu0 %585
        %v587 = vrcp.pop %v586
        %v589 = vsel %vm577, %v583, 0
        %591 = vmatprep.subr.mxu0 0.0
        %592 = vmatpush1.msra.mxu0 %v499
        %593 = vmatprep.subr.mxu0 0.0
        %594 = vmatpush1.msra.mxu0 0.0
        %595 = vmatprep.subr.mxu0 0.0
        %596 = vmatpush1.msra.mxu0 0.0
        %597 = vmatprep.subr.mxu0 0.0
        %598 = vmatpush1.msra.mxu0 0.0
        %599 = vmatprep.subr.mxu0 0.0
        %600 = vmatpush1.msra.mxu0 0.0
        %601 = vmatprep.subr.mxu0 0.0
        %602 = vmatpush1.msra.mxu0 0.0
        %603 = vmatprep.subr.mxu0 0.0
        %604 = vmatpush1.msra.mxu0 0.0
        %605 = vmatprep.subr.mxu0 0.0
        %606 = vmatpush1.msra.mxu0 0.0
        %607 = vmatprep.subr.mxu0 0.0
        %608 = vmatpush1.msra.mxu0 0.0
        %609 = vmatprep.subr.mxu0 0.0
        %610 = vmatpush1.msra.mxu0 0.0
        %611 = vmatprep.subr.mxu0 0.0
        %612 = vmatpush1.msra.mxu0 0.0
        %613 = vmatprep.subr.mxu0 0.0
        %614 = vmatpush1.msra.mxu0 0.0
        %615 = vmatprep.subr.mxu0 0.0
        %616 = vmatpush1.msra.mxu0 0.0
        %617 = vmatprep.subr.mxu0 0.0
        %618 = vmatpush1.msra.mxu0 0.0
        %619 = vmatprep.subr.mxu0 0.0
        %620 = vmatpush1.msra.mxu0 0.0
        %621 = vmatprep.subr.mxu0 0.0
        %622 = vmatpush1.msra.mxu0 0.0
        %623 = vmatprep.subr.mxu0 0.0
        %624 = vmatpush1.msra.mxu0 0.0
        %625 = vmatprep.subr.mxu0 0.0
        %626 = vmatpush1.msra.mxu0 0.0
        %627 = vmatprep.subr.mxu0 0.0
        %628 = vmatpush1.msra.mxu0 0.0
        %629 = vmatprep.subr.mxu0 0.0
        %630 = vmatpush1.msra.mxu0 0.0
        %631 = vmatprep.subr.mxu0 0.0
        %632 = vmatpush1.msra.mxu0 0.0
        %633 = vmatprep.subr.mxu0 0.0
        %634 = vmatpush1.msra.mxu0 0.0
        %635 = vmatprep.subr.mxu0 0.0
        %636 = vmatpush1.msra.mxu0 0.0
        %637 = vmatprep.subr.mxu0 0.0
        %638 = vmatpush1.msra.mxu0 0.0
        %639 = vmatprep.subr.mxu0 0.0
        %640 = vmatpush1.msra.mxu0 0.0
        %641 = vmatprep.subr.mxu0 0.0
        %642 = vmatpush1.msra.mxu0 0.0
        %643 = vmatprep.subr.mxu0 0.0
        %644 = vmatpush1.msra.mxu0 0.0
        %645 = vmatprep.subr.mxu0 0.0
        %646 = vmatpush1.msra.mxu0 0.0
        %647 = vmatprep.subr.mxu0 0.0
        %648 = vmatpush1.msra.mxu0 0.0
        %649 = vmatprep.subr.mxu0 0.0
        %650 = vmatpush1.msra.mxu0 0.0
        %651 = vmatprep.subr.mxu0 0.0
        %652 = vmatpush1.msra.mxu0 0.0
        %653 = vmatprep.subr.mxu0 0.0
        %654 = vmatpush1.msra.mxu0 0.0
        %655 = vmatprep.mubr.f32.mxu0 0.0
        %656 = vmatmul.mubr.f32.gmra.mrb[0].mxu0 %v589
        %v657 = vpop.f32.mrb[0].mxu0
        %v658 = vadd.f32 0.0, %v657
        %v659 = vpop.f32.mrb[0].mxu0
        %660 = vdwg.mxu0
        %v661 = vmul.f32 %v658, %v587
        %662 = vst.msk [vmem:[#allocation5] sm:$0xff] %vm500, %v661
        %v663 = vld [vmem:[#allocation2] sm:$0xff]
        %v664 = vld [vmem:[#allocation3] sm:$0xff]
        %v665 = vld [vmem:[#allocation4] sm:$0xff]
        %667 = vrot.lane.b32.xlu0 %v663, 112
        %v668 = vpop.permute.xlu0 %667
        %670 = vrot.lane.b32.xlu0 %v664, 112
        %v671 = vpop.permute.xlu0 %670
        %v672 = vsel %vm500, %v668, 0
        %v674 = vsel %vm500, %v671, 0
        %676 = vmatprep.subr.mxu0 0.0
        %677 = vmatpush1.xpose.msra.mxu0 %v674
        %678 = vmatprep.subr.mxu0 0.0
        %679 = vmatpush1.xpose.msra.mxu0 0.0
        %680 = vmatprep.subr.mxu0 0.0
        %681 = vmatpush1.xpose.msra.mxu0 0.0
        %682 = vmatprep.subr.mxu0 0.0
        %683 = vmatpush1.xpose.msra.mxu0 0.0
        %684 = vmatprep.subr.mxu0 0.0
        %685 = vmatpush1.xpose.msra.mxu0 0.0
        %686 = vmatprep.subr.mxu0 0.0
        %687 = vmatpush1.xpose.msra.mxu0 0.0
        %688 = vmatprep.subr.mxu0 0.0
        %689 = vmatpush1.xpose.msra.mxu0 0.0
        %690 = vmatprep.subr.mxu0 0.0
        %691 = vmatpush1.xpose.msra.mxu0 0.0
        %692 = vmatprep.subr.mxu0 0.0
        %693 = vmatpush1.xpose.msra.mxu0 0.0
        %694 = vmatprep.subr.mxu0 0.0
        %695 = vmatpush1.xpose.msra.mxu0 0.0
        %696 = vmatprep.subr.mxu0 0.0
        %697 = vmatpush1.xpose.msra.mxu0 0.0
        %698 = vmatprep.subr.mxu0 0.0
        %699 = vmatpush1.xpose.msra.mxu0 0.0
        %700 = vmatprep.subr.mxu0 0.0
        %701 = vmatpush1.xpose.msra.mxu0 0.0
        %702 = vmatprep.subr.mxu0 0.0
        %703 = vmatpush1.xpose.msra.mxu0 0.0
        %704 = vmatprep.subr.mxu0 0.0
        %705 = vmatpush1.xpose.msra.mxu0 0.0
        %706 = vmatprep.subr.mxu0 0.0
        %707 = vmatpush1.xpose.msra.mxu0 0.0
        %708 = vmatprep.subr.mxu0 0.0
        %709 = vmatpush1.xpose.msra.mxu0 0.0
        %710 = vmatprep.subr.mxu0 0.0
        %711 = vmatpush1.xpose.msra.mxu0 0.0
        %712 = vmatprep.subr.mxu0 0.0
        %713 = vmatpush1.xpose.msra.mxu0 0.0
        %714 = vmatprep.subr.mxu0 0.0
        %715 = vmatpush1.xpose.msra.mxu0 0.0
        %716 = vmatprep.subr.mxu0 0.0
        %717 = vmatpush1.xpose.msra.mxu0 0.0
        %718 = vmatprep.subr.mxu0 0.0
        %719 = vmatpush1.xpose.msra.mxu0 0.0
        %720 = vmatprep.subr.mxu0 0.0
        %721 = vmatpush1.xpose.msra.mxu0 0.0
        %722 = vmatprep.subr.mxu0 0.0
        %723 = vmatpush1.xpose.msra.mxu0 0.0
        %724 = vmatprep.subr.mxu0 0.0
        %725 = vmatpush1.xpose.msra.mxu0 0.0
        %726 = vmatprep.subr.mxu0 0.0
        %727 = vmatpush1.xpose.msra.mxu0 0.0
        %728 = vmatprep.subr.mxu0 0.0
        %729 = vmatpush1.xpose.msra.mxu0 0.0
        %730 = vmatprep.subr.mxu0 0.0
        %731 = vmatpush1.xpose.msra.mxu0 0.0
        %732 = vmatprep.subr.mxu0 0.0
        %733 = vmatpush1.xpose.msra.mxu0 0.0
        %734 = vmatprep.subr.mxu0 0.0
        %735 = vmatpush1.xpose.msra.mxu0 0.0
        %736 = vmatprep.subr.mxu0 0.0
        %737 = vmatpush1.xpose.msra.mxu0 0.0
        %738 = vmatprep.subr.mxu0 0.0
        %739 = vmatpush1.xpose.msra.mxu0 0.0
        %740 = vmatprep.mubr.f32.mxu0 0.0
        %741 = vmatmul.mubr.f32.gmra.mrb[0].mxu0 %v672
        %v742 = vpop.f32.mrb[0].mxu0
        %v743 = vadd.f32 0.0, %v742
        %v744 = vpop.f32.mrb[0].mxu0
        %745 = vdwg.mxu0
        %v746 = vsel %vm577, %v743, -inf
        %747 = vmax.xlane.f32.xlu0 %v746
        %v748 = vpop.xlane.xlu0 %747
        %v749 = vsub.f32 %v743, %v748
        %v750 = vmul.f32 %v749, 1.442695
        %v751 = vpow.pop %v750
        %v752 = vsel %vm577, %v751, 0.0
        %753 = vadd.xlane.f32.xlu0 %v752
        %v754 = vpop.xlane.xlu0 %753
        %v755 = vrcp.pop %v754
        %757 = vrot.lane.b32.xlu0 %v665, 112
        %v758 = vpop.permute.xlu0 %757
        %v761 = vsel %vm577, %v751, 0
        %763 = vmatprep.subr.mxu0 0.0
        %764 = vmatpush1.msra.mxu0 %v758
        %765 = vmatprep.subr.mxu0 0.0
        %766 = vmatpush1.msra.mxu0 0.0
        %767 = vmatprep.subr.mxu0 0.0
        %768 = vmatpush1.msra.mxu0 0.0
        %769 = vmatprep.subr.mxu0 0.0
        %770 = vmatpush1.msra.mxu0 0.0
        %771 = vmatprep.subr.mxu0 0.0
        %772 = vmatpush1.msra.mxu0 0.0
        %773 = vmatprep.subr.mxu0 0.0
        %774 = vmatpush1.msra.mxu0 0.0
        %775 = vmatprep.subr.mxu0 0.0
        %776 = vmatpush1.msra.mxu0 0.0
        %777 = vmatprep.subr.mxu0 0.0
        %778 = vmatpush1.msra.mxu0 0.0
        %779 = vmatprep.subr.mxu0 0.0
        %780 = vmatpush1.msra.mxu0 0.0
        %781 = vmatprep.subr.mxu0 0.0
        %782 = vmatpush1.msra.mxu0 0.0
        %783 = vmatprep.subr.mxu0 0.0
        %784 = vmatpush1.msra.mxu0 0.0
        %785 = vmatprep.subr.mxu0 0.0
        %786 = vmatpush1.msra.mxu0 0.0
        %787 = vmatprep.subr.mxu0 0.0
        %788 = vmatpush1.msra.mxu0 0.0
        %789 = vmatprep.subr.mxu0 0.0
        %790 = vmatpush1.msra.mxu0 0.0
        %791 = vmatprep.subr.mxu0 0.0
        %792 = vmatpush1.msra.mxu0 0.0
        %793 = vmatprep.subr.mxu0 0.0
        %794 = vmatpush1.msra.mxu0 0.0
        %795 = vmatprep.subr.mxu0 0.0
        %796 = vmatpush1.msra.mxu0 0.0
        %797 = vmatprep.subr.mxu0 0.0
        %798 = vmatpush1.msra.mxu0 0.0
        %799 = vmatprep.subr.mxu0 0.0
        %800 = vmatpush1.msra.mxu0 0.0
        %801 = vmatprep.subr.mxu0 0.0
        %802 = vmatpush1.msra.mxu0 0.0
        %803 = vmatprep.subr.mxu0 0.0
        %804 = vmatpush1.msra.mxu0 0.0
        %805 = vmatprep.subr.mxu0 0.0
        %806 = vmatpush1.msra.mxu0 0.0
        %807 = vmatprep.subr.mxu0 0.0
        %808 = vmatpush1.msra.mxu0 0.0
        %809 = vmatprep.subr.mxu0 0.0
        %810 = vmatpush1.msra.mxu0 0.0
        %811 = vmatprep.subr.mxu0 0.0
        %812 = vmatpush1.msra.mxu0 0.0
        %813 = vmatprep.subr.mxu0 0.0
        %814 = vmatpush1.msra.mxu0 0.0
        %815 = vmatprep.subr.mxu0 0.0
        %816 = vmatpush1.msra.mxu0 0.0
        %817 = vmatprep.subr.mxu0 0.0
        %818 = vmatpush1.msra.mxu0 0.0
        %819 = vmatprep.subr.mxu0 0.0
        %820 = vmatpush1.msra.mxu0 0.0
        %821 = vmatprep.subr.mxu0 0.0
        %822 = vmatpush1.msra.mxu0 0.0
        %823 = vmatprep.subr.mxu0 0.0
        %824 = vmatpush1.msra.mxu0 0.0
        %825 = vmatprep.subr.mxu0 0.0
        %826 = vmatpush1.msra.mxu0 0.0
        %827 = vmatprep.mubr.f32.mxu0 0.0
        %828 = vmatmul.mubr.f32.gmra.mrb[0].mxu0 %v761
        %v829 = vpop.f32.mrb[0].mxu0
        %v830 = vadd.f32 0.0, %v829
        %v831 = vpop.f32.mrb[0].mxu0
        %832 = vdwg.mxu0
        %v833 = vmul.f32 %v830, %v755
        %835 = vrot.lane.b32.xlu0 %v833, 16
        %v836 = vpop.permute.xlu0 %835
        %vm838 = vcmask 261248
        %839 = vst.msk [vmem:[#allocation5] sm:$0xff] %vm838, %v836
        %v840 = vld [vmem:[#allocation2] sm:$0xff]
        %v841 = vld [vmem:[#allocation3] sm:$0xff]
        %v842 = vld [vmem:[#allocation4] sm:$0xff]
        %844 = vrot.lane.b32.xlu0 %v840, 96
        %v845 = vpop.permute.xlu0 %844
        %847 = vrot.lane.b32.xlu0 %v841, 96
        %v848 = vpop.permute.xlu0 %847
        %v849 = vsel %vm500, %v845, 0
        %v851 = vsel %vm500, %v848, 0
        %853 = vmatprep.subr.mxu0 0.0
        %854 = vmatpush1.xpose.msra.mxu0 %v851
        %855 = vmatprep.subr.mxu0 0.0
        %856 = vmatpush1.xpose.msra.mxu0 0.0
        %857 = vmatprep.subr.mxu0 0.0
        %858 = vmatpush1.xpose.msra.mxu0 0.0
        %859 = vmatprep.subr.mxu0 0.0
        %860 = vmatpush1.xpose.msra.mxu0 0.0
        %861 = vmatprep.subr.mxu0 0.0
        %862 = vmatpush1.xpose.msra.mxu0 0.0
        %863 = vmatprep.subr.mxu0 0.0
        %864 = vmatpush1.xpose.msra.mxu0 0.0
        %865 = vmatprep.subr.mxu0 0.0
        %866 = vmatpush1.xpose.msra.mxu0 0.0
        %867 = vmatprep.subr.mxu0 0.0
        %868 = vmatpush1.xpose.msra.mxu0 0.0
        %869 = vmatprep.subr.mxu0 0.0
        %870 = vmatpush1.xpose.msra.mxu0 0.0
        %871 = vmatprep.subr.mxu0 0.0
        %872 = vmatpush1.xpose.msra.mxu0 0.0
        %873 = vmatprep.subr.mxu0 0.0
        %874 = vmatpush1.xpose.msra.mxu0 0.0
        %875 = vmatprep.subr.mxu0 0.0
        %876 = vmatpush1.xpose.msra.mxu0 0.0
        %877 = vmatprep.subr.mxu0 0.0
        %878 = vmatpush1.xpose.msra.mxu0 0.0
        %879 = vmatprep.subr.mxu0 0.0
        %880 = vmatpush1.xpose.msra.mxu0 0.0
        %881 = vmatprep.subr.mxu0 0.0
        %882 = vmatpush1.xpose.msra.mxu0 0.0
        %883 = vmatprep.subr.mxu0 0.0
        %884 = vmatpush1.xpose.msra.mxu0 0.0
        %885 = vmatprep.subr.mxu0 0.0
        %886 = vmatpush1.xpose.msra.mxu0 0.0
        %887 = vmatprep.subr.mxu0 0.0
        %888 = vmatpush1.xpose.msra.mxu0 0.0
        %889 = vmatprep.subr.mxu0 0.0
        %890 = vmatpush1.xpose.msra.mxu0 0.0
        %891 = vmatprep.subr.mxu0 0.0
        %892 = vmatpush1.xpose.msra.mxu0 0.0
        %893 = vmatprep.subr.mxu0 0.0
        %894 = vmatpush1.xpose.msra.mxu0 0.0
        %895 = vmatprep.subr.mxu0 0.0
        %896 = vmatpush1.xpose.msra.mxu0 0.0
        %897 = vmatprep.subr.mxu0 0.0
        %898 = vmatpush1.xpose.msra.mxu0 0.0
        %899 = vmatprep.subr.mxu0 0.0
        %900 = vmatpush1.xpose.msra.mxu0 0.0
        %901 = vmatprep.subr.mxu0 0.0
        %902 = vmatpush1.xpose.msra.mxu0 0.0
        %903 = vmatprep.subr.mxu0 0.0
        %904 = vmatpush1.xpose.msra.mxu0 0.0
        %905 = vmatprep.subr.mxu0 0.0
        %906 = vmatpush1.xpose.msra.mxu0 0.0
        %907 = vmatprep.subr.mxu0 0.0
        %908 = vmatpush1.xpose.msra.mxu0 0.0
        %909 = vmatprep.subr.mxu0 0.0
        %910 = vmatpush1.xpose.msra.mxu0 0.0
        %911 = vmatprep.subr.mxu0 0.0
        %912 = vmatpush1.xpose.msra.mxu0 0.0
        %913 = vmatprep.subr.mxu0 0.0
        %914 = vmatpush1.xpose.msra.mxu0 0.0
        %915 = vmatprep.subr.mxu0 0.0
        %916 = vmatpush1.xpose.msra.mxu0 0.0
        %917 = vmatprep.mubr.f32.mxu0 0.0
        %918 = vmatmul.mubr.f32.gmra.mrb[0].mxu0 %v849
        %v919 = vpop.f32.mrb[0].mxu0
        %v920 = vadd.f32 0.0, %v919
        %v921 = vpop.f32.mrb[0].mxu0
        %922 = vdwg.mxu0
        %v923 = vsel %vm577, %v920, -inf
        %924 = vmax.xlane.f32.xlu0 %v923
        %v925 = vpop.xlane.xlu0 %924
        %v926 = vsub.f32 %v920, %v925
        %v927 = vmul.f32 %v926, 1.442695
        %v928 = vpow.pop %v927
        %v929 = vsel %vm577, %v928, 0.0
        %930 = vadd.xlane.f32.xlu0 %v929
        %v931 = vpop.xlane.xlu0 %930
        %v932 = vrcp.pop %v931
        %934 = vrot.lane.b32.xlu0 %v842, 96
        %v935 = vpop.permute.xlu0 %934
        %v938 = vsel %vm577, %v928, 0
        %940 = vmatprep.subr.mxu0 0.0
        %941 = vmatpush1.msra.mxu0 %v935
        %942 = vmatprep.subr.mxu0 0.0
        %943 = vmatpush1.msra.mxu0 0.0
        %944 = vmatprep.subr.mxu0 0.0
        %945 = vmatpush1.msra.mxu0 0.0
        %946 = vmatprep.subr.mxu0 0.0
        %947 = vmatpush1.msra.mxu0 0.0
        %948 = vmatprep.subr.mxu0 0.0
        %949 = vmatpush1.msra.mxu0 0.0
        %950 = vmatprep.subr.mxu0 0.0
        %951 = vmatpush1.msra.mxu0 0.0
        %952 = vmatprep.subr.mxu0 0.0
        %953 = vmatpush1.msra.mxu0 0.0
        %954 = vmatprep.subr.mxu0 0.0
        %955 = vmatpush1.msra.mxu0 0.0
        %956 = vmatprep.subr.mxu0 0.0
        %957 = vmatpush1.msra.mxu0 0.0
        %958 = vmatprep.subr.mxu0 0.0
        %959 = vmatpush1.msra.mxu0 0.0
        %960 = vmatprep.subr.mxu0 0.0
        %961 = vmatpush1.msra.mxu0 0.0
        %962 = vmatprep.subr.mxu0 0.0
        %963 = vmatpush1.msra.mxu0 0.0
        %964 = vmatprep.subr.mxu0 0.0
        %965 = vmatpush1.msra.mxu0 0.0
        %966 = vmatprep.subr.mxu0 0.0
        %967 = vmatpush1.msra.mxu0 0.0
        %968 = vmatprep.subr.mxu0 0.0
        %969 = vmatpush1.msra.mxu0 0.0
        %970 = vmatprep.subr.mxu0 0.0
        %971 = vmatpush1.msra.mxu0 0.0
        %972 = vmatprep.subr.mxu0 0.0
        %973 = vmatpush1.msra.mxu0 0.0
        %974 = vmatprep.subr.mxu0 0.0
        %975 = vmatpush1.msra.mxu0 0.0
        %976 = vmatprep.subr.mxu0 0.0
        %977 = vmatpush1.msra.mxu0 0.0
        %978 = vmatprep.subr.mxu0 0.0
        %979 = vmatpush1.msra.mxu0 0.0
        %980 = vmatprep.subr.mxu0 0.0
        %981 = vmatpush1.msra.mxu0 0.0
        %982 = vmatprep.subr.mxu0 0.0
        %983 = vmatpush1.msra.mxu0 0.0
        %984 = vmatprep.subr.mxu0 0.0
        %985 = vmatpush1.msra.mxu0 0.0
        %986 = vmatprep.subr.mxu0 0.0
        %987 = vmatpush1.msra.mxu0 0.0
        %988 = vmatprep.subr.mxu0 0.0
        %989 = vmatpush1.msra.mxu0 0.0
        %990 = vmatprep.subr.mxu0 0.0
        %991 = vmatpush1.msra.mxu0 0.0
        %992 = vmatprep.subr.mxu0 0.0
        %993 = vmatpush1.msra.mxu0 0.0
        %994 = vmatprep.subr.mxu0 0.0
        %995 = vmatpush1.msra.mxu0 0.0
        %996 = vmatprep.subr.mxu0 0.0
        %997 = vmatpush1.msra.mxu0 0.0
        %998 = vmatprep.subr.mxu0 0.0
        %999 = vmatpush1.msra.mxu0 0.0
        %1000 = vmatprep.subr.mxu0 0.0
        %1001 = vmatpush1.msra.mxu0 0.0
        %1002 = vmatprep.subr.mxu0 0.0
        %1003 = vmatpush1.msra.mxu0 0.0
        %1004 = vmatprep.mubr.f32.mxu0 0.0
        %1005 = vmatmul.mubr.f32.gmra.mrb[0].mxu0 %v938
        %v1006 = vpop.f32.mrb[0].mxu0
        %v1007 = vadd.f32 0.0, %v1006
        %v1008 = vpop.f32.mrb[0].mxu0
        %1009 = vdwg.mxu0
        %v1010 = vmul.f32 %v1007, %v932
        %1012 = vrot.lane.b32.xlu0 %v1010, 32
        %v1013 = vpop.permute.xlu0 %1012
        %vm1015 = vcmask 392448
        %1016 = vst.msk [vmem:[#allocation5] sm:$0xff] %vm1015, %v1013
        %v1017 = vld [vmem:[#allocation2] sm:$0xff]
        %v1018 = vld [vmem:[#allocation3] sm:$0xff]
        %v1019 = vld [vmem:[#allocation4] sm:$0xff]
        %1021 = vrot.lane.b32.xlu0 %v1017, 80
        %v1022 = vpop.permute.xlu0 %1021
        %1024 = vrot.lane.b32.xlu0 %v1018, 80
        %v1025 = vpop.permute.xlu0 %1024
        %v1026 = vsel %vm500, %v1022, 0
        %v1028 = vsel %vm500, %v1025, 0
        %1030 = vmatprep.subr.mxu0 0.0
        %1031 = vmatpush1.xpose.msra.mxu0 %v1028
        %1032 = vmatprep.subr.mxu0 0.0
        %1033 = vmatpush1.xpose.msra.mxu0 0.0
        %1034 = vmatprep.subr.mxu0 0.0
        %1035 = vmatpush1.xpose.msra.mxu0 0.0
        %1036 = vmatprep.subr.mxu0 0.0
        %1037 = vmatpush1.xpose.msra.mxu0 0.0
        %1038 = vmatprep.subr.mxu0 0.0
        %1039 = vmatpush1.xpose.msra.mxu0 0.0
        %1040 = vmatprep.subr.mxu0 0.0
        %1041 = vmatpush1.xpose.msra.mxu0 0.0
        %1042 = vmatprep.subr.mxu0 0.0
        %1043 = vmatpush1.xpose.msra.mxu0 0.0
        %1044 = vmatprep.subr.mxu0 0.0
        %1045 = vmatpush1.xpose.msra.mxu0 0.0
        %1046 = vmatprep.subr.mxu0 0.0
        %1047 = vmatpush1.xpose.msra.mxu0 0.0
        %1048 = vmatprep.subr.mxu0 0.0
        %1049 = vmatpush1.xpose.msra.mxu0 0.0
        %1050 = vmatprep.subr.mxu0 0.0
        %1051 = vmatpush1.xpose.msra.mxu0 0.0
        %1052 = vmatprep.subr.mxu0 0.0
        %1053 = vmatpush1.xpose.msra.mxu0 0.0
        %1054 = vmatprep.subr.mxu0 0.0
        %1055 = vmatpush1.xpose.msra.mxu0 0.0
        %1056 = vmatprep.subr.mxu0 0.0
        %1057 = vmatpush1.xpose.msra.mxu0 0.0
        %1058 = vmatprep.subr.mxu0 0.0
        %1059 = vmatpush1.xpose.msra.mxu0 0.0
        %1060 = vmatprep.subr.mxu0 0.0
        %1061 = vmatpush1.xpose.msra.mxu0 0.0
        %1062 = vmatprep.subr.mxu0 0.0
        %1063 = vmatpush1.xpose.msra.mxu0 0.0
        %1064 = vmatprep.subr.mxu0 0.0
        %1065 = vmatpush1.xpose.msra.mxu0 0.0
        %1066 = vmatprep.subr.mxu0 0.0
        %1067 = vmatpush1.xpose.msra.mxu0 0.0
        %1068 = vmatprep.subr.mxu0 0.0
        %1069 = vmatpush1.xpose.msra.mxu0 0.0
        %1070 = vmatprep.subr.mxu0 0.0
        %1071 = vmatpush1.xpose.msra.mxu0 0.0
        %1072 = vmatprep.subr.mxu0 0.0
        %1073 = vmatpush1.xpose.msra.mxu0 0.0
        %1074 = vmatprep.subr.mxu0 0.0
        %1075 = vmatpush1.xpose.msra.mxu0 0.0
        %1076 = vmatprep.subr.mxu0 0.0
        %1077 = vmatpush1.xpose.msra.mxu0 0.0
        %1078 = vmatprep.subr.mxu0 0.0
        %1079 = vmatpush1.xpose.msra.mxu0 0.0
        %1080 = vmatprep.subr.mxu0 0.0
        %1081 = vmatpush1.xpose.msra.mxu0 0.0
        %1082 = vmatprep.subr.mxu0 0.0
        %1083 = vmatpush1.xpose.msra.mxu0 0.0
        %1084 = vmatprep.subr.mxu0 0.0
        %1085 = vmatpush1.xpose.msra.mxu0 0.0
        %1086 = vmatprep.subr.mxu0 0.0
        %1087 = vmatpush1.xpose.msra.mxu0 0.0
        %1088 = vmatprep.subr.mxu0 0.0
        %1089 = vmatpush1.xpose.msra.mxu0 0.0
        %1090 = vmatprep.subr.mxu0 0.0
        %1091 = vmatpush1.xpose.msra.mxu0 0.0
        %1092 = vmatprep.subr.mxu0 0.0
        %1093 = vmatpush1.xpose.msra.mxu0 0.0
        %1094 = vmatprep.mubr.f32.mxu0 0.0
        %1095 = vmatmul.mubr.f32.gmra.mrb[0].mxu0 %v1026
        %v1096 = vpop.f32.mrb[0].mxu0
        %v1097 = vadd.f32 0.0, %v1096
        %v1098 = vpop.f32.mrb[0].mxu0
        %1099 = vdwg.mxu0
        %v1100 = vsel %vm577, %v1097, -inf
        %1101 = vmax.xlane.f32.xlu0 %v1100
        %v1102 = vpop.xlane.xlu0 %1101
        %v1103 = vsub.f32 %v1097, %v1102
        %v1104 = vmul.f32 %v1103, 1.442695
        %v1105 = vpow.pop %v1104
        %v1106 = vsel %vm577, %v1105, 0.0
        %1107 = vadd.xlane.f32.xlu0 %v1106
        %v1108 = vpop.xlane.xlu0 %1107
        %v1109 = vrcp.pop %v1108
        %1111 = vrot.lane.b32.xlu0 %v1019, 80
        %v1112 = vpop.permute.xlu0 %1111
        %v1115 = vsel %vm577, %v1105, 0
        %1117 = vmatprep.subr.mxu0 0.0
        %1118 = vmatpush1.msra.mxu0 %v1112
        %1119 = vmatprep.subr.mxu0 0.0
        %1120 = vmatpush1.msra.mxu0 0.0
        %1121 = vmatprep.subr.mxu0 0.0
        %1122 = vmatpush1.msra.mxu0 0.0
        %1123 = vmatprep.subr.mxu0 0.0
        %1124 = vmatpush1.msra.mxu0 0.0
        %1125 = vmatprep.subr.mxu0 0.0
        %1126 = vmatpush1.msra.mxu0 0.0
        %1127 = vmatprep.subr.mxu0 0.0
        %1128 = vmatpush1.msra.mxu0 0.0
        %1129 = vmatprep.subr.mxu0 0.0
        %1130 = vmatpush1.msra.mxu0 0.0
        %1131 = vmatprep.subr.mxu0 0.0
        %1132 = vmatpush1.msra.mxu0 0.0
        %1133 = vmatprep.subr.mxu0 0.0
        %1134 = vmatpush1.msra.mxu0 0.0
        %1135 = vmatprep.subr.mxu0 0.0
        %1136 = vmatpush1.msra.mxu0 0.0
        %1137 = vmatprep.subr.mxu0 0.0
        %1138 = vmatpush1.msra.mxu0 0.0
        %1139 = vmatprep.subr.mxu0 0.0
        %1140 = vmatpush1.msra.mxu0 0.0
        %1141 = vmatprep.subr.mxu0 0.0
        %1142 = vmatpush1.msra.mxu0 0.0
        %1143 = vmatprep.subr.mxu0 0.0
        %1144 = vmatpush1.msra.mxu0 0.0
        %1145 = vmatprep.subr.mxu0 0.0
        %1146 = vmatpush1.msra.mxu0 0.0
        %1147 = vmatprep.subr.mxu0 0.0
        %1148 = vmatpush1.msra.mxu0 0.0
        %1149 = vmatprep.subr.mxu0 0.0
        %1150 = vmatpush1.msra.mxu0 0.0
        %1151 = vmatprep.subr.mxu0 0.0
        %1152 = vmatpush1.msra.mxu0 0.0
        %1153 = vmatprep.subr.mxu0 0.0
        %1154 = vmatpush1.msra.mxu0 0.0
        %1155 = vmatprep.subr.mxu0 0.0
        %1156 = vmatpush1.msra.mxu0 0.0
        %1157 = vmatprep.subr.mxu0 0.0
        %1158 = vmatpush1.msra.mxu0 0.0
        %1159 = vmatprep.subr.mxu0 0.0
        %1160 = vmatpush1.msra.mxu0 0.0
        %1161 = vmatprep.subr.mxu0 0.0
        %1162 = vmatpush1.msra.mxu0 0.0
        %1163 = vmatprep.subr.mxu0 0.0
        %1164 = vmatpush1.msra.mxu0 0.0
        %1165 = vmatprep.subr.mxu0 0.0
        %1166 = vmatpush1.msra.mxu0 0.0
        %1167 = vmatprep.subr.mxu0 0.0
        %1168 = vmatpush1.msra.mxu0 0.0
        %1169 = vmatprep.subr.mxu0 0.0
        %1170 = vmatpush1.msra.mxu0 0.0
        %1171 = vmatprep.subr.mxu0 0.0
        %1172 = vmatpush1.msra.mxu0 0.0
        %1173 = vmatprep.subr.mxu0 0.0
        %1174 = vmatpush1.msra.mxu0 0.0
        %1175 = vmatprep.subr.mxu0 0.0
        %1176 = vmatpush1.msra.mxu0 0.0
        %1177 = vmatprep.subr.mxu0 0.0
        %1178 = vmatpush1.msra.mxu0 0.0
        %1179 = vmatprep.subr.mxu0 0.0
        %1180 = vmatpush1.msra.mxu0 0.0
        %1181 = vmatprep.mubr.f32.mxu0 0.0
        %1182 = vmatmul.mubr.f32.gmra.mrb[0].mxu0 %v1115
        %v1183 = vpop.f32.mrb[0].mxu0
        %v1184 = vadd.f32 0.0, %v1183
        %v1185 = vpop.f32.mrb[0].mxu0
        %1186 = vdwg.mxu0
        %v1187 = vmul.f32 %v1184, %v1109
        %1189 = vrot.lane.b32.xlu0 %v1187, 48
        %v1190 = vpop.permute.xlu0 %1189
        %vm1192 = vcmask 523648
        %1193 = vst.msk [vmem:[#allocation5] sm:$0xff] %vm1192, %v1190
        %v1194 = vld [vmem:[#allocation5] sm:$0xff]
        %v1195 = vld [vmem:[%s4] sm:$0xff]
        %v1196 = vld [vmem:[%s4 + $0x8] sm:$0xff]
        %v1197 = vld [vmem:[%s4 + $0x10] sm:$0xff]
        %v1198 = vld [vmem:[%s4 + $0x18] sm:$0xff]
        %v1199 = vld [vmem:[%s4 + $0x20] sm:$0xff]
        %v1200 = vld [vmem:[%s4 + $0x28] sm:$0xff]
        %v1201 = vld [vmem:[%s4 + $0x30] sm:$0xff]
        %v1202 = vld [vmem:[%s4 + $0x38] sm:$0xff]
        %v1204 = vsel %vm495, %v1194, 0
        %1206 = vmatprep.subr.mxu0 0.0
        %1207 = vmatpush1.msra.mxu0 %v1195
        %1208 = vmatprep.subr.mxu0 0.0
        %1209 = vmatpush1.msra.mxu0 %v1196
        %1210 = vmatprep.subr.mxu0 0.0
        %1211 = vmatpush1.msra.mxu0 %v1197
        %1212 = vmatprep.subr.mxu0 0.0
        %1213 = vmatpush1.msra.mxu0 %v1198
        %1214 = vmatprep.subr.mxu0 0.0
        %1215 = vmatpush1.msra.mxu0 %v1199
        %1216 = vmatprep.subr.mxu0 0.0
        %1217 = vmatpush1.msra.mxu0 %v1200
        %1218 = vmatprep.subr.mxu0 0.0
        %1219 = vmatpush1.msra.mxu0 %v1201
        %1220 = vmatprep.subr.mxu0 0.0
        %1221 = vmatpush1.msra.mxu0 %v1202
        %1222 = vmatprep.subr.mxu0 0.0
        %1223 = vmatpush1.msra.mxu0 0.0
        %1224 = vmatprep.subr.mxu0 0.0
        %1225 = vmatpush1.msra.mxu0 0.0
        %1226 = vmatprep.subr.mxu0 0.0
        %1227 = vmatpush1.msra.mxu0 0.0
        %1228 = vmatprep.subr.mxu0 0.0
        %1229 = vmatpush1.msra.mxu0 0.0
        %1230 = vmatprep.subr.mxu0 0.0
        %1231 = vmatpush1.msra.mxu0 0.0
        %1232 = vmatprep.subr.mxu0 0.0
        %1233 = vmatpush1.msra.mxu0 0.0
        %1234 = vmatprep.subr.mxu0 0.0
        %1235 = vmatpush1.msra.mxu0 0.0
        %1236 = vmatprep.subr.mxu0 0.0
        %1237 = vmatpush1.msra.mxu0 0.0
        %1238 = vmatprep.subr.mxu0 0.0
        %1239 = vmatpush1.msra.mxu0 0.0
        %1240 = vmatprep.subr.mxu0 0.0
        %1241 = vmatpush1.msra.mxu0 0.0
        %1242 = vmatprep.subr.mxu0 0.0
        %1243 = vmatpush1.msra.mxu0 0.0
        %1244 = vmatprep.subr.mxu0 0.0
        %1245 = vmatpush1.msra.mxu0 0.0
        %1246 = vmatprep.subr.mxu0 0.0
        %1247 = vmatpush1.msra.mxu0 0.0
        %1248 = vmatprep.subr.mxu0 0.0
        %1249 = vmatpush1.msra.mxu0 0.0
        %1250 = vmatprep.subr.mxu0 0.0
        %1251 = vmatpush1.msra.mxu0 0.0
        %1252 = vmatprep.subr.mxu0 0.0
        %1253 = vmatpush1.msra.mxu0 0.0
        %1254 = vmatprep.subr.mxu0 0.0
        %1255 = vmatpush1.msra.mxu0 0.0
        %1256 = vmatprep.subr.mxu0 0.0
        %1257 = vmatpush1.msra.mxu0 0.0
        %1258 = vmatprep.subr.mxu0 0.0
        %1259 = vmatpush1.msra.mxu0 0.0
        %1260 = vmatprep.subr.mxu0 0.0
        %1261 = vmatpush1.msra.mxu0 0.0
        %1262 = vmatprep.subr.mxu0 0.0
        %1263 = vmatpush1.msra.mxu0 0.0
        %1264 = vmatprep.subr.mxu0 0.0
        %1265 = vmatpush1.msra.mxu0 0.0
        %1266 = vmatprep.subr.mxu0 0.0
        %1267 = vmatpush1.msra.mxu0 0.0
        %1268 = vmatprep.subr.mxu0 0.0
        %1269 = vmatpush1.msra.mxu0 0.0
        %1270 = vmatprep.mubr.f32.mxu0 0.0
        %1271 = vmatmul.mubr.f32.gmra.mrb[0].mxu0 %v1204
        %v1272 = vpop.f32.mrb[0].mxu0
        %v1273 = vadd.f32 0.0, %v1272
        %v1274 = vpop.f32.mrb[0].mxu0
        %1275 = vdwg.mxu0
        %1276 = vst.msk [vmem:[%s253] sm:$0xff] %vm421, %v1273
        %s1277 = sand.u32 %s154, 1
        %s1278 = scalar_lea.sflag [#allocation8], %s1277
        %s1279 = sand.u32 %s154, 1
        %s1280 = smul.addr %s1279, 8
        %s1281 = scalar_lea.vmem [#allocation9], %s1280
        // Predicated region
        $region49: #{tpu_custom_call.1} parent=39 // pred_check
          %p1282 = pneg %p164
        $region50: #{tpu_custom_call.1} parent=39 // pred_check_branch
          %1284 = sbr.rel (%p1282) target = $region52
        $region51: #{tpu_custom_call.1} parent=39 // pred_region
          %s1286 = ssub.s32 128, 128
          %1287 = vsyncadd %s1278, %s1286
          %s1288 = sadd.s32 %s27, %s26
          %s1289 = smul.addr %s1288, 128
          %s1290 = scalar_lea.hbm %s5, %s1289
          %s1292 = sshll.u32 %s1281, 4
          %s1293 = int_to_ptr.vmem [resolvable:$true] %s1292
          %1295 = dma.vmem_to_hbm [thread:$0]  %s1293, 128, %s1290, %s1278
        $region52: #{tpu_custom_call.1} parent=39 // pred_fallthru
          _
      $region40: #{tpu_custom_call.1} parent=5 // pred_fallthru
        _
      %p1296 = scmp.le.s32.totalorder 2, %s17
      // Predicated region
      $region53: #{tpu_custom_call.1} parent=5 // pred_check
        %p1297 = pneg %p1296
      $region54: #{tpu_custom_call.1} parent=5 // pred_check_branch
        %1299 = sbr.rel (%p1297) target = $region56
      $region55: #{tpu_custom_call.1} parent=5 // pred_region
        %s1300 = ssub.s32 %s17, 2
        // Predicated region
        $region57: #{tpu_custom_call.1} parent=55 // pred_check
          %p1301 = pneg %p170
        $region58: #{tpu_custom_call.1} parent=55 // pred_check_branch
          %1303 = sbr.rel (%p1301) target = $region60
        $region59: #{tpu_custom_call.1} parent=55 // pred_region
          %s1304 = sand.u32 %s155, 1
          %s1305 = scalar_lea.sflag [#allocation8], %s1304
          %s1306 = sand.u32 %s155, 1
          %s1307 = smul.addr %s1306, 8
          %s1308 = scalar_lea.vmem [#allocation9], %s1307
          %1309 = dma.done %s1305, 128
        $region60: #{tpu_custom_call.1} parent=55 // pred_fallthru
          _
      $region56: #{tpu_custom_call.1} parent=5 // pred_fallthru
        _
    $region6: #{tpu_custom_call.1} parent=1 // loop_footer
      %s21 = sadd.s32 1, %s17
    $region7: #{tpu_custom_call.1} parent=1 // loop_footer_branch
      %16 = sbr.rel target = $region3
    $region8: #{tpu_custom_call.1} parent=1 // loop_exit
      _
    %1310 = vsyncpa [#allocation7], 1
    %s1311 = scalar_lea.sflag [#allocation7], 1
    %1312 = vsyncpa %s1311, 1
    %1313 = vsyncpa [#allocation8], 1
    %s1314 = scalar_lea.sflag [#allocation8], 1
    %1315 = vsyncpa %s1314, 1

</llo_original>
